<compile_context>
chip_gen: v6e
topology: v6e:2x2x1
jax: 0.10.0
libtpu: 0.0.40
codegen_flags: <defaults>
</compile_context>

<pallas_src>
import math
from functools import partial

import jax
import jax.numpy as jnp
from jax import lax
from jax.experimental import pallas as pl
from jax.experimental.pallas import tpu as pltpu


# ----------------------------------------------------------------------------
# Kernel 1: per-instance projections (classes^T, Q, V), tiled over N.
# ----------------------------------------------------------------------------
def _proj_kernel(feats_ref, wi_ref, bi_ref, wq1_ref, bq1_ref, wq2_ref, bq2_ref,
                 wv_ref, bv_ref, cls_ref, q_ref, v_ref):
    f32 = jnp.float32
    feats = feats_ref[...]                                            # [tN, D] bf16

    # i_classifier, lane-dense: classes^T = wi [C, D] . feats^T -> [C, tN]
    cls = lax.dot_general(wi_ref[...], feats,
                          dimension_numbers=(((1,), (1,)), ((), ())),
                          preferred_element_type=f32)
    cls_ref[...] = (cls + bi_ref[...]).astype(cls_ref.dtype)          # bi is [C, 1]

    # q branch: Linear(D,128) -> ReLU -> Linear(128,128) -> Tanh
    h = jnp.maximum(
        jnp.dot(feats, wq1_ref[...], preferred_element_type=f32) + bq1_ref[...],
        0.0)                                                          # [tN, 128] f32
    q = jnp.tanh(
        jnp.dot(h.astype(feats.dtype), wq2_ref[...], preferred_element_type=f32)
        + bq2_ref[...])
    q_ref[...] = q.astype(q_ref.dtype)

    # v branch: Dropout(0) -> Linear(D, D) -> ReLU
    v = jnp.maximum(
        jnp.dot(feats, wv_ref[...], preferred_element_type=f32) + bv_ref[...],
        0.0)                                                          # [tN, D]
    v_ref[...] = v.astype(v_ref.dtype)


# ----------------------------------------------------------------------------
# Kernel 2: attention (online softmax over instances) + bag embedding + fcc.
# ----------------------------------------------------------------------------
def _attn_kernel(qmax_ref, q_ref, v_ref, wfcc_ref, bfcc_ref,
                 b_ref, logits_ref, m_sc, l_sc, bacc_sc):
    f32 = jnp.float32
    n = pl.program_id(0)

    @pl.when(n == 0)
    def _():
        m_sc[...] = jnp.full_like(m_sc, -jnp.inf)
        l_sc[...] = jnp.zeros_like(l_sc)
        bacc_sc[...] = jnp.zeros_like(bacc_sc)

    # scaled scores for this tile, lane-dense: [C, tN]
    scale = 1.0 / math.sqrt(float(qmax_ref.shape[1]))
    s = lax.dot_general(qmax_ref[...], q_ref[...],
                        dimension_numbers=(((1,), (1,)), ((), ())),
                        preferred_element_type=f32) * scale

    # online softmax over instances (axis=-1 of the [C, N] scores)
    m_new = jnp.maximum(m_sc[...], jnp.max(s, axis=1, keepdims=True))  # [C, 1]
    alpha = jnp.exp(m_sc[...] - m_new)
    p = jnp.exp(s - m_new)                                             # [C, tN]
    l_sc[...] = alpha * l_sc[...] + jnp.sum(p, axis=1, keepdims=True)
    bacc_sc[...] = alpha * bacc_sc[...] + jnp.dot(
        p, v_ref[...].astype(f32), preferred_element_type=f32)         # [C, D]
    m_sc[...] = m_new

    @pl.when(n == pl.num_programs(0) - 1)
    def _():
        bag = bacc_sc[...] * pl.reciprocal(l_sc[...], approx=False)    # B = A^T V, [C, D]
        b_ref[...] = bag.astype(b_ref.dtype)
        # fcc: Conv1d(C, C, kernel_size=D) on B[1, C, D] -> [1, C]
        t = jnp.sum(wfcc_ref[...] * bag[None, :, :], axis=2)           # [C_out, C_in]
        logits_ref[...] = (jnp.sum(t, axis=1)[None, :] + bfcc_ref[...]
                           ).astype(logits_ref.dtype)


# ----------------------------------------------------------------------------
# Wrapper
# ----------------------------------------------------------------------------
def _pick_tile_n(n):
    """Largest 128-multiple tile giving >=2 grid steps; fall back to a single tile."""
    if n % 128 == 0:
        for t in (512, 256, 128):
            if n % t == 0 and n // t >= 2:
                return t
        return 128
    return n


def _nbytes(shape, dtype):
    return int(math.prod(shape)) * jnp.dtype(dtype).itemsize


def _vmem_limit(blocks):
    """Scoped-VMEM limit sized from the per-step block footprint (double-buffered).

    Capped at 64 MiB so the request is valid on v7x as well as v5e/v6e.
    """
    need = 2 * sum(_nbytes(s, d) for s, d in blocks) + (4 << 20)
    return int(min(64 << 20, max(32 << 20, need)))


def dsmil_forward(x, params, return_attn=False):
    """x: [1, N, D] (as in DSMIL.forward).

    Returns (B [1,C,D], logits [1,C], classes_bag [1,C]) and, if return_attn,
    also attn [1,N] (attn_index='max', cls_attn=True path of the module)."""
    f32, bf16 = jnp.float32, jnp.bfloat16
    feats = x[0]
    N, D = feats.shape
    C = params["wi"].shape[0]
    QD = params["wq1"].shape[0]          # 128
    tn = _pick_tile_n(N)
    grid = (N // tn,)

    # Layout plumbing in the wrapper (free): pre-transpose linear weights to
    # [in, out], cast MXU operands to bf16, reshape biases for broadcast.
    feats_b = feats.astype(bf16)
    wi = params["wi"].astype(bf16)                 # [C, D]  (QK^T-style contraction)
    bi = params["bi"].reshape(C, 1).astype(f32)    # [C, 1]
    wq1 = params["wq1"].T.astype(bf16)             # [D, 128]
    bq1 = params["bq1"].astype(f32)                # [1, 128]
    wq2 = params["wq2"].T.astype(bf16)             # [128, 128]
    bq2 = params["bq2"].astype(f32)                # [1, 128]
    wv = params["wv"].T.astype(bf16)               # [D, D]
    bv = params["bv"].astype(f32)                  # [1, D]
    wfcc = params["wfcc"].astype(f32)              # [C, C, D]
    bfcc = params["bfcc"].astype(f32)              # [1, C]

    def const(shape):
        return pl.BlockSpec(shape, lambda n, _s=len(shape): (0,) * _s)

    # ---- Kernel 1: projections ------------------------------------------------
    k1_blocks = [((tn, D), bf16), ((C, D), bf16), ((C, 1), f32),
                 ((D, QD), bf16), ((1, QD), f32), ((QD, QD), bf16), ((1, QD), f32),
                 ((D, D), bf16), ((1, D), f32),
                 ((C, tn), f32), ((tn, QD), bf16), ((tn, D), bf16)]
    cls_cn, Q, V = pl.pallas_call(
        _proj_kernel,
        out_shape=(jax.ShapeDtypeStruct((C, N), f32),      # classes^T (lane-dense)
                   jax.ShapeDtypeStruct((N, QD), bf16),     # Q
                   jax.ShapeDtypeStruct((N, D), bf16)),     # V
        grid_spec=pltpu.PrefetchScalarGridSpec(
            num_scalar_prefetch=0, grid=grid,
            in_specs=[pl.BlockSpec((tn, D), lambda n: (n, 0)),
                      const((C, D)), const((C, 1)),
                      const((D, QD)), const((1, QD)),
                      const((QD, QD)), const((1, QD)),
                      const((D, D)), const((1, D))],
            out_specs=[pl.BlockSpec((C, tn), lambda n: (0, n)),
                       pl.BlockSpec((tn, QD), lambda n: (n, 0)),
                       pl.BlockSpec((tn, D), lambda n: (n, 0))]),
        compiler_params=pltpu.CompilerParams(
            dimension_semantics=("parallel",),
            vmem_limit_bytes=_vmem_limit(k1_blocks)),
    )(feats_b, wi, bi, wq1, bq1, wq2, bq2, wv, bv)

    # ---- Tiny glue (O(N*C), C==2): bag class max + critical-instance gather ---
    classes_bag = jnp.max(cls_cn, axis=1)[None, :]          # [1, C]
    top = jnp.argmax(cls_cn, axis=1)                        # [C] critical instance/class
    q_max = Q[top]                                          # [C, 128] bf16 (== q(m_feats))

    # ---- Kernel 2: attention + bag embedding + fcc -----------------------------
    k2_blocks = [((C, QD), bf16), ((tn, QD), bf16), ((tn, D), bf16),
                 ((C, C, D), f32), ((1, C), f32),
                 ((C, D), f32), ((1, C), f32), ((C, D), f32)]
    B, logits = pl.pallas_call(
        _attn_kernel,
        out_shape=(jax.ShapeDtypeStruct((C, D), f32),        # bag embedding B
                   jax.ShapeDtypeStruct((1, C), f32)),       # prediction_bag
        grid_spec=pltpu.PrefetchScalarGridSpec(
            num_scalar_prefetch=0, grid=grid,
            in_specs=[const((C, QD)),
                      pl.BlockSpec((tn, QD), lambda n: (n, 0)),
                      pl.BlockSpec((tn, D), lambda n: (n, 0)),
                      const((C, C, D)), const((1, C))],
            out_specs=[pl.BlockSpec((C, D), lambda n: (0, 0)),
                       pl.BlockSpec((1, C), lambda n: (0, 0))],
            scratch_shapes=[pltpu.VMEM((C, 1), f32),         # running max
                            pltpu.VMEM((C, 1), f32),         # running sum
                            pltpu.VMEM((C, D), f32)]),       # B accumulator
        compiler_params=pltpu.CompilerParams(
            dimension_semantics=("arbitrary",),
            vmem_limit_bytes=_vmem_limit(k2_blocks)),
    )(q_max, Q, V, wfcc, bfcc)

    B = B.reshape(1, C, D)                                   # flat_B=False keeps 3-D
    if return_attn:
        # attn_index='max', cls_attn=True: per-instance max over classes.
        attn = jnp.max(cls_cn, axis=0)[None, :]              # [1, N]
        return B, logits, classes_bag, attn
    return B, logits, classes_bag


# ----------------------------------------------------------------------------
# Params + reference
# ----------------------------------------------------------------------------
def init_params(key, mlp_dim, n_classes, q_dim=128):
    """Deterministic xavier-normal weights, zero biases (matching initialize_weights)."""
    ks = jax.random.split(key, 6)

    def xavier(k, shape):
        fan_out = shape[0]
        fan_in = int(math.prod(shape[1:]))
        std = math.sqrt(2.0 / (fan_in + fan_out))
        return std * jax.random.normal(k, shape, dtype=jnp.float32)

    return {
        "wi": xavier(ks[0], (n_classes, mlp_dim)),          # i_classifier Linear(D, C)
        "bi": jnp.zeros((1, n_classes), jnp.float32),
        "wq1": xavier(ks[1], (q_dim, mlp_dim)),             # q: Linear(D,128)
        "bq1": jnp.zeros((1, q_dim), jnp.float32),
        "wq2": xavier(ks[2], (q_dim, q_dim)),               # q: Linear(128,128)
        "bq2": jnp.zeros((1, q_dim), jnp.float32),
        "wv": xavier(ks[3], (mlp_dim, mlp_dim)),            # v: Linear(D, D)
        "bv": jnp.zeros((1, mlp_dim), jnp.float32),
        "wfcc": xavier(ks[4], (n_classes, n_classes, mlp_dim)),  # Conv1d(C, C, D)
        "bfcc": jnp.zeros((1, n_classes), jnp.float32),
    }


def _reference_forward(x, p):
    """Pure-JAX reference mirroring the kernel's bf16-matmul / f32-accumulate math."""
    f32, bf16 = jnp.float32, jnp.bfloat16
    feats = x[0].astype(bf16)
    C = p["wi"].shape[0]

    cls_cn = lax.dot_general(p["wi"].astype(bf16), feats,
                             dimension_numbers=(((1,), (1,)), ((), ())),
                             preferred_element_type=f32) + p["bi"].reshape(C, 1)
    h = jax.nn.relu(jnp.dot(feats, p["wq1"].T.astype(bf16),
                            preferred_element_type=f32) + p["bq1"])
    Q = jnp.tanh(jnp.dot(h.astype(bf16), p["wq2"].T.astype(bf16),
                         preferred_element_type=f32) + p["bq2"]).astype(bf16)
    V = jax.nn.relu(jnp.dot(feats, p["wv"].T.astype(bf16),
                            preferred_element_type=f32) + p["bv"]).astype(bf16)

    top = jnp.argmax(cls_cn, axis=1)
    q_max = Q[top]
    S = lax.dot_general(q_max, Q, (((1,), (1,)), ((), ())),
                        preferred_element_type=f32) * (1.0 / math.sqrt(float(Q.shape[1])))
    A_cn = jax.nn.softmax(S, axis=1)
    B = jnp.dot(A_cn, V.astype(f32), preferred_element_type=f32)
    logits = jnp.einsum("oid,id->o", p["wfcc"], B)[None, :] + p["bfcc"]
    cbag = jnp.max(cls_cn, axis=1)[None, :]
    attn = jnp.max(cls_cn, axis=0)[None, :]
    return B[None], logits, cbag, attn


if __name__ == "__main__":
    # Small shapes consistent with DSMIL: N instances, mlp_dim D, n_classes C.
    N, D, C = 256, 128, 2
    key = jax.random.PRNGKey(0)
    kx, kp = jax.random.split(key)
    x = jax.random.normal(kx, (1, N, D), dtype=jnp.float32)
    params = init_params(kp, D, C)

    fwd = jax.jit(partial(dsmil_forward, return_attn=True))
    B, logits, other, attn = fwd(x, params)
    jax.block_until_ready((B, logits, other, attn))

    Br, lr, orr, ar = _reference_forward(x, params)
    assert B.shape == (1, C, D) and logits.shape == (1, C)
    assert other.shape == (1, C) and attn.shape == (1, N)
    assert jnp.allclose(B, Br, atol=2e-3, rtol=2e-3), float(jnp.max(jnp.abs(B - Br)))
    assert jnp.allclose(logits, lr, atol=2e-3, rtol=2e-3), float(jnp.max(jnp.abs(logits - lr)))
    assert jnp.allclose(other, orr, atol=2e-3, rtol=2e-3), float(jnp.max(jnp.abs(other - orr)))
    assert jnp.allclose(attn, ar, atol=2e-3, rtol=2e-3), float(jnp.max(jnp.abs(attn - ar)))

    print("KERNEL_OK")
</pallas_src>

<mosaic_0001>
module attributes {stable_mosaic.version = 11 : i64} {
  func.func @_proj_kernel(%arg0: i32, %arg1: memref<128x128xbf16, #tpu.memory_space<vmem>>, %arg2: memref<2x128xbf16, #tpu.memory_space<vmem>>, %arg3: memref<2x1xf32, #tpu.memory_space<vmem>>, %arg4: memref<128x128xbf16, #tpu.memory_space<vmem>>, %arg5: memref<1x128xf32, #tpu.memory_space<vmem>>, %arg6: memref<128x128xbf16, #tpu.memory_space<vmem>>, %arg7: memref<1x128xf32, #tpu.memory_space<vmem>>, %arg8: memref<128x128xbf16, #tpu.memory_space<vmem>>, %arg9: memref<1x128xf32, #tpu.memory_space<vmem>>, %arg10: memref<2x128xf32, #tpu.memory_space<vmem>>, %arg11: memref<128x128xbf16, #tpu.memory_space<vmem>>, %arg12: memref<128x128xbf16, #tpu.memory_space<vmem>>) attributes {dimension_semantics = [#tpu.dimension_semantics<parallel>], iteration_bounds = array<i64: 2>, scalar_prefetch = 0 : i64, scratch_operands = 0 : i64, tpu.core_type = #tpu.core_type<tc>, window_params = [{transform_indices = @transform_0, window_bounds = array<i64: 128, 128>}, {pipeline_mode = #tpu.pipeline_mode<synchronous>, transform_indices = @transform_1, window_bounds = array<i64: 2, 128>}, {pipeline_mode = #tpu.pipeline_mode<synchronous>, transform_indices = @transform_2, window_bounds = array<i64: 2, 1>}, {pipeline_mode = #tpu.pipeline_mode<synchronous>, transform_indices = @transform_3, window_bounds = array<i64: 128, 128>}, {pipeline_mode = #tpu.pipeline_mode<synchronous>, transform_indices = @transform_4, window_bounds = array<i64: 1, 128>}, {pipeline_mode = #tpu.pipeline_mode<synchronous>, transform_indices = @transform_5, window_bounds = array<i64: 128, 128>}, {pipeline_mode = #tpu.pipeline_mode<synchronous>, transform_indices = @transform_6, window_bounds = array<i64: 1, 128>}, {pipeline_mode = #tpu.pipeline_mode<synchronous>, transform_indices = @transform_7, window_bounds = array<i64: 128, 128>}, {pipeline_mode = #tpu.pipeline_mode<synchronous>, transform_indices = @transform_8, window_bounds = array<i64: 1, 128>}, {transform_indices = @transform_9, window_bounds = array<i64: 2, 128>}, {transform_indices = @transform_10, window_bounds = array<i64: 128, 128>}, {transform_indices = @transform_11, window_bounds = array<i64: 128, 128>}]} {
    %c0 = arith.constant 0 : index
    %c0_0 = arith.constant 0 : index
    %0 = vector.load %arg1[%c0, %c0_0] : memref<128x128xbf16, #tpu.memory_space<vmem>>, vector<128x128xbf16>
    %c0_1 = arith.constant 0 : index
    %c0_2 = arith.constant 0 : index
    %1 = vector.load %arg2[%c0_1, %c0_2] : memref<2x128xbf16, #tpu.memory_space<vmem>>, vector<2x128xbf16>
    %cst = arith.constant dense<0.000000e+00> : vector<2x128xf32>
    %2 = tpu.matmul %1, %0, %cst {dimension_numbers = #tpu.dot_dimension_numbers<[1], [1], [0], [0], [0, 0, 1, 0], [], []>} : vector<2x128xbf16>, vector<128x128xbf16>, vector<2x128xf32> -> vector<2x128xf32>
    %c0_3 = arith.constant 0 : index
    %c0_4 = arith.constant 0 : index
    %3 = vector.load %arg3[%c0_3, %c0_4] : memref<2x1xf32, #tpu.memory_space<vmem>>, vector<2x1xf32>
    %4 = vector.broadcast %3 : vector<2x1xf32> to vector<2x128xf32>
    %5 = arith.addf %2, %4 : vector<2x128xf32>
    %c0_5 = arith.constant 0 : index
    %c0_6 = arith.constant 0 : index
    %6 = vector.load %arg10[%c0_5, %c0_6] : memref<2x128xf32, #tpu.memory_space<vmem>>, vector<2x128xf32>
    tpu.vector_store %arg10[%c0_5, %c0_6], %5 {strides = array<i32>} : memref<2x128xf32, #tpu.memory_space<vmem>>, vector<2x128xf32>,
    %c0_7 = arith.constant 0 : index
    %c0_8 = arith.constant 0 : index
    %7 = vector.load %arg4[%c0_7, %c0_8] : memref<128x128xbf16, #tpu.memory_space<vmem>>, vector<128x128xbf16>
    %cst_9 = arith.constant dense<0.000000e+00> : vector<128x128xf32>
    %8 = tpu.matmul %0, %7, %cst_9 {dimension_numbers = #tpu.dot_dimension_numbers<[1], [0], [0], [1], [0, 0, 1, 1], [], []>} : vector<128x128xbf16>, vector<128x128xbf16>, vector<128x128xf32> -> vector<128x128xf32>
    %c0_10 = arith.constant 0 : index
    %c0_11 = arith.constant 0 : index
    %9 = vector.load %arg5[%c0_10, %c0_11] : memref<1x128xf32, #tpu.memory_space<vmem>>, vector<1x128xf32>
    %10 = vector.broadcast %9 : vector<1x128xf32> to vector<128x128xf32>
    %11 = arith.addf %8, %10 : vector<128x128xf32>
    %cst_12 = arith.constant 0.000000e+00 : f32
    %12 = vector.broadcast %cst_12 : f32 to vector<128x128xf32>
    %13 = arith.maximumf %11, %12 : vector<128x128xf32>
    %14 = arith.truncf %13 : vector<128x128xf32> to vector<128x128xbf16>
    %c0_13 = arith.constant 0 : index
    %c0_14 = arith.constant 0 : index
    %15 = vector.load %arg6[%c0_13, %c0_14] : memref<128x128xbf16, #tpu.memory_space<vmem>>, vector<128x128xbf16>
    %cst_15 = arith.constant dense<0.000000e+00> : vector<128x128xf32>
    %16 = tpu.matmul %14, %15, %cst_15 {dimension_numbers = #tpu.dot_dimension_numbers<[1], [0], [0], [1], [0, 0, 1, 1], [], []>} : vector<128x128xbf16>, vector<128x128xbf16>, vector<128x128xf32> -> vector<128x128xf32>
    %c0_16 = arith.constant 0 : index
    %c0_17 = arith.constant 0 : index
    %17 = vector.load %arg7[%c0_16, %c0_17] : memref<1x128xf32, #tpu.memory_space<vmem>>, vector<1x128xf32>
    %18 = vector.broadcast %17 : vector<1x128xf32> to vector<128x128xf32>
    %19 = arith.addf %16, %18 : vector<128x128xf32>
    %20 = math.tanh %19 : vector<128x128xf32>
    %21 = arith.truncf %20 : vector<128x128xf32> to vector<128x128xbf16>
    %c0_18 = arith.constant 0 : index
    %c0_19 = arith.constant 0 : index
    %22 = vector.load %arg11[%c0_18, %c0_19] : memref<128x128xbf16, #tpu.memory_space<vmem>>, vector<128x128xbf16>
    tpu.vector_store %arg11[%c0_18, %c0_19], %21 {strides = array<i32>} : memref<128x128xbf16, #tpu.memory_space<vmem>>, vector<128x128xbf16>,
    %c0_20 = arith.constant 0 : index
    %c0_21 = arith.constant 0 : index
    %23 = vector.load %arg8[%c0_20, %c0_21] : memref<128x128xbf16, #tpu.memory_space<vmem>>, vector<128x128xbf16>
    %cst_22 = arith.constant dense<0.000000e+00> : vector<128x128xf32>
    %24 = tpu.matmul %0, %23, %cst_22 {dimension_numbers = #tpu.dot_dimension_numbers<[1], [0], [0], [1], [0, 0, 1, 1], [], []>} : vector<128x128xbf16>, vector<128x128xbf16>, vector<128x128xf32> -> vector<128x128xf32>
    %c0_23 = arith.constant 0 : index
    %c0_24 = arith.constant 0 : index
    %25 = vector.load %arg9[%c0_23, %c0_24] : memref<1x128xf32, #tpu.memory_space<vmem>>, vector<1x128xf32>
    %26 = vector.broadcast %25 : vector<1x128xf32> to vector<128x128xf32>
    %27 = arith.addf %24, %26 : vector<128x128xf32>
    %cst_25 = arith.constant 0.000000e+00 : f32
    %28 = vector.broadcast %cst_25 : f32 to vector<128x128xf32>
    %29 = arith.maximumf %27, %28 : vector<128x128xf32>
    %30 = arith.truncf %29 : vector<128x128xf32> to vector<128x128xbf16>
    %c0_26 = arith.constant 0 : index
    %c0_27 = arith.constant 0 : index
    %31 = vector.load %arg12[%c0_26, %c0_27] : memref<128x128xbf16, #tpu.memory_space<vmem>>, vector<128x128xbf16>
    tpu.vector_store %arg12[%c0_26, %c0_27], %30 {strides = array<i32>} : memref<128x128xbf16, #tpu.memory_space<vmem>>, vector<128x128xbf16>,
    return
  }
  func.func @transform_0(%arg0: i32) -> (i32, i32) {
    %c0_i32 = arith.constant 0 : i32
    %c0_i32_0 = arith.constant 0 : i32
    return %arg0, %c0_i32 : i32, i32
  }
  func.func @transform_1(%arg0: i32) -> (i32, i32) {
    %c0_i32 = arith.constant 0 : i32
    %c0_i32_0 = arith.constant 0 : i32
    %c0_i32_1 = arith.constant 0 : i32
    return %c0_i32, %c0_i32_0 : i32, i32
  }
  func.func @transform_2(%arg0: i32) -> (i32, i32) {
    %c0_i32 = arith.constant 0 : i32
    %c0_i32_0 = arith.constant 0 : i32
    %c0_i32_1 = arith.constant 0 : i32
    return %c0_i32, %c0_i32_0 : i32, i32
  }
  func.func @transform_3(%arg0: i32) -> (i32, i32) {
    %c0_i32 = arith.constant 0 : i32
    %c0_i32_0 = arith.constant 0 : i32
    %c0_i32_1 = arith.constant 0 : i32
    return %c0_i32, %c0_i32_0 : i32, i32
  }
  func.func @transform_4(%arg0: i32) -> (i32, i32) {
    %c0_i32 = arith.constant 0 : i32
    %c0_i32_0 = arith.constant 0 : i32
    %c0_i32_1 = arith.constant 0 : i32
    return %c0_i32, %c0_i32_0 : i32, i32
  }
  func.func @transform_5(%arg0: i32) -> (i32, i32) {
    %c0_i32 = arith.constant 0 : i32
    %c0_i32_0 = arith.constant 0 : i32
    %c0_i32_1 = arith.constant 0 : i32
    return %c0_i32, %c0_i32_0 : i32, i32
  }
  func.func @transform_6(%arg0: i32) -> (i32, i32) {
    %c0_i32 = arith.constant 0 : i32
    %c0_i32_0 = arith.constant 0 : i32
    %c0_i32_1 = arith.constant 0 : i32
    return %c0_i32, %c0_i32_0 : i32, i32
  }
  func.func @transform_7(%arg0: i32) -> (i32, i32) {
    %c0_i32 = arith.constant 0 : i32
    %c0_i32_0 = arith.constant 0 : i32
    %c0_i32_1 = arith.constant 0 : i32
    return %c0_i32, %c0_i32_0 : i32, i32
  }
  func.func @transform_8(%arg0: i32) -> (i32, i32) {
    %c0_i32 = arith.constant 0 : i32
    %c0_i32_0 = arith.constant 0 : i32
    %c0_i32_1 = arith.constant 0 : i32
    return %c0_i32, %c0_i32_0 : i32, i32
  }
  func.func @transform_9(%arg0: i32) -> (i32, i32) {
    %c0_i32 = arith.constant 0 : i32
    %c0_i32_0 = arith.constant 0 : i32
    return %c0_i32, %arg0 : i32, i32
  }
  func.func @transform_10(%arg0: i32) -> (i32, i32) {
    %c0_i32 = arith.constant 0 : i32
    %c0_i32_0 = arith.constant 0 : i32
    return %arg0, %c0_i32 : i32, i32
  }
  func.func @transform_11(%arg0: i32) -> (i32, i32) {
    %c0_i32 = arith.constant 0 : i32
    %c0_i32_0 = arith.constant 0 : i32
    return %arg0, %c0_i32 : i32, i32
  }
}

module attributes {stable_mosaic.version = 11 : i64} {
  func.func @_attn_kernel(%arg0: i32, %arg1: memref<2x128xbf16, #tpu.memory_space<vmem>>, %arg2: memref<128x128xbf16, #tpu.memory_space<vmem>>, %arg3: memref<128x128xbf16, #tpu.memory_space<vmem>>, %arg4: memref<2x2x128xf32, #tpu.memory_space<vmem>>, %arg5: memref<1x2xf32, #tpu.memory_space<vmem>>, %arg6: memref<2x128xf32, #tpu.memory_space<vmem>>, %arg7: memref<1x2xf32, #tpu.memory_space<vmem>>, %arg8: memref<2x1xf32, #tpu.memory_space<vmem>>, %arg9: memref<2x1xf32, #tpu.memory_space<vmem>>, %arg10: memref<2x128xf32, #tpu.memory_space<vmem>>) attributes {dimension_semantics = [#tpu.dimension_semantics<arbitrary>], iteration_bounds = array<i64: 2>, scalar_prefetch = 0 : i64, scratch_operands = 3 : i64, tpu.core_type = #tpu.core_type<tc>, window_params = [{pipeline_mode = #tpu.pipeline_mode<synchronous>, transform_indices = @transform_0, window_bounds = array<i64: 2, 128>}, {transform_indices = @transform_1, window_bounds = array<i64: 128, 128>}, {transform_indices = @transform_2, window_bounds = array<i64: 128, 128>}, {pipeline_mode = #tpu.pipeline_mode<synchronous>, transform_indices = @transform_3, window_bounds = array<i64: 2, 2, 128>}, {pipeline_mode = #tpu.pipeline_mode<synchronous>, transform_indices = @transform_4, window_bounds = array<i64: 1, 2>}, {pipeline_mode = #tpu.pipeline_mode<synchronous>, transform_indices = @transform_5, window_bounds = array<i64: 2, 128>}, {pipeline_mode = #tpu.pipeline_mode<synchronous>, transform_indices = @transform_6, window_bounds = array<i64: 1, 2>}]} {
    %c0_i32 = arith.constant 0 : i32
    %0 = arith.cmpi eq, %arg0, %c0_i32 : i32
    %1 = arith.extui %0 : i1 to i32
    %c0_i32_0 = arith.constant 0 : i32
    %2 = arith.cmpi ne, %1, %c0_i32_0 : i32
    scf.if %2 {
      %cst_25 = arith.constant 0xFF800000 : f32
      %36 = vector.broadcast %cst_25 : f32 to vector<2x1xf32>
      %c0_26 = arith.constant 0 : index
      %c0_27 = arith.constant 0 : index
      %37 = vector.load %arg8[%c0_26, %c0_27] : memref<2x1xf32, #tpu.memory_space<vmem>>, vector<2x1xf32>
      tpu.vector_store %arg8[%c0_26, %c0_27], %36 {strides = array<i32>} : memref<2x1xf32, #tpu.memory_space<vmem>>, vector<2x1xf32>,
      %cst_28 = arith.constant 0.000000e+00 : f32
      %38 = vector.broadcast %cst_28 : f32 to vector<2x1xf32>
      %c0_29 = arith.constant 0 : index
      %c0_30 = arith.constant 0 : index
      %39 = vector.load %arg9[%c0_29, %c0_30] : memref<2x1xf32, #tpu.memory_space<vmem>>, vector<2x1xf32>
      tpu.vector_store %arg9[%c0_29, %c0_30], %38 {strides = array<i32>} : memref<2x1xf32, #tpu.memory_space<vmem>>, vector<2x1xf32>,
      %cst_31 = arith.constant 0.000000e+00 : f32
      %40 = vector.broadcast %cst_31 : f32 to vector<2x128xf32>
      %c0_32 = arith.constant 0 : index
      %c0_33 = arith.constant 0 : index
      %41 = vector.load %arg10[%c0_32, %c0_33] : memref<2x128xf32, #tpu.memory_space<vmem>>, vector<2x128xf32>
      tpu.vector_store %arg10[%c0_32, %c0_33], %40 {strides = array<i32>} : memref<2x128xf32, #tpu.memory_space<vmem>>, vector<2x128xf32>,
    } else {
    }
    %c0 = arith.constant 0 : index
    %c0_1 = arith.constant 0 : index
    %3 = vector.load %arg1[%c0, %c0_1] : memref<2x128xbf16, #tpu.memory_space<vmem>>, vector<2x128xbf16>
    %c0_2 = arith.constant 0 : index
    %c0_3 = arith.constant 0 : index
    %4 = vector.load %arg2[%c0_2, %c0_3] : memref<128x128xbf16, #tpu.memory_space<vmem>>, vector<128x128xbf16>
    %cst = arith.constant dense<0.000000e+00> : vector<2x128xf32>
    %5 = tpu.matmul %3, %4, %cst {dimension_numbers = #tpu.dot_dimension_numbers<[1], [1], [0], [0], [0, 0, 1, 0], [], []>} : vector<2x128xbf16>, vector<128x128xbf16>, vector<2x128xf32> -> vector<2x128xf32>
    %cst_4 = arith.constant 0.0883883461 : f32
    %6 = vector.broadcast %cst_4 : f32 to vector<2x128xf32>
    %7 = arith.mulf %5, %6 : vector<2x128xf32>
    %c0_5 = arith.constant 0 : index
    %c0_6 = arith.constant 0 : index
    %8 = vector.load %arg8[%c0_5, %c0_6] : memref<2x1xf32, #tpu.memory_space<vmem>>, vector<2x1xf32>
    %cst_7 = arith.constant dense<0xFF800000> : vector<2xf32>
    %9 = vector.multi_reduction <maximumf>, %7, %cst_7 [1] : vector<2x128xf32> to vector<2xf32>
    %10 = vector.shape_cast %9 : vector<2xf32> to vector<2x1xf32>
    %11 = arith.maximumf %8, %10 : vector<2x1xf32>
    %c0_8 = arith.constant 0 : index
    %c0_9 = arith.constant 0 : index
    %12 = vector.load %arg8[%c0_8, %c0_9] : memref<2x1xf32, #tpu.memory_space<vmem>>, vector<2x1xf32>
    %13 = arith.subf %12, %11 : vector<2x1xf32>
    %14 = math.exp %13 : vector<2x1xf32>
    %15 = vector.broadcast %11 : vector<2x1xf32> to vector<2x128xf32>
    %16 = arith.subf %7, %15 : vector<2x128xf32>
    %17 = math.exp %16 : vector<2x128xf32>
    %c0_10 = arith.constant 0 : index
    %c0_11 = arith.constant 0 : index
    %18 = vector.load %arg9[%c0_10, %c0_11] : memref<2x1xf32, #tpu.memory_space<vmem>>, vector<2x1xf32>
    %19 = arith.mulf %14, %18 : vector<2x1xf32>
    %cst_12 = arith.constant dense<0.000000e+00> : vector<2xf32>
    %20 = vector.multi_reduction <add>, %17, %cst_12 [1] : vector<2x128xf32> to vector<2xf32>
    %21 = vector.shape_cast %20 : vector<2xf32> to vector<2x1xf32>
    %22 = arith.addf %19, %21 : vector<2x1xf32>
    %c0_13 = arith.constant 0 : index
    %c0_14 = arith.constant 0 : index
    %23 = vector.load %arg9[%c0_13, %c0_14] : memref<2x1xf32, #tpu.memory_space<vmem>>, vector<2x1xf32>
    tpu.vector_store %arg9[%c0_13, %c0_14], %22 {strides = array<i32>} : memref<2x1xf32, #tpu.memory_space<vmem>>, vector<2x1xf32>,
    %c0_15 = arith.constant 0 : index
    %c0_16 = arith.constant 0 : index
    %24 = vector.load %arg10[%c0_15, %c0_16] : memref<2x128xf32, #tpu.memory_space<vmem>>, vector<2x128xf32>
    %25 = vector.broadcast %14 : vector<2x1xf32> to vector<2x128xf32>
    %26 = arith.mulf %25, %24 : vector<2x128xf32>
    %c0_17 = arith.constant 0 : index
    %c0_18 = arith.constant 0 : index
    %27 = vector.load %arg3[%c0_17, %c0_18] : memref<128x128xbf16, #tpu.memory_space<vmem>>, vector<128x128xbf16>
    %28 = arith.extf %27 : vector<128x128xbf16> to vector<128x128xf32>
    %cst_19 = arith.constant dense<0.000000e+00> : vector<2x128xf32>
    %29 = tpu.matmul %17, %28, %cst_19 {dimension_numbers = #tpu.dot_dimension_numbers<[1], [0], [0], [1], [0, 0, 1, 1], [], []>} : vector<2x128xf32>, vector<128x128xf32>, vector<2x128xf32> -> vector<2x128xf32>
    %30 = arith.addf %26, %29 : vector<2x128xf32>
    %c0_20 = arith.constant 0 : index
    %c0_21 = arith.constant 0 : index
    %31 = vector.load %arg10[%c0_20, %c0_21] : memref<2x128xf32, #tpu.memory_space<vmem>>, vector<2x128xf32>
    tpu.vector_store %arg10[%c0_20, %c0_21], %30 {strides = array<i32>} : memref<2x128xf32, #tpu.memory_space<vmem>>, vector<2x128xf32>,
    %c0_22 = arith.constant 0 : index
    %c0_23 = arith.constant 0 : index
    %32 = vector.load %arg8[%c0_22, %c0_23] : memref<2x1xf32, #tpu.memory_space<vmem>>, vector<2x1xf32>
    tpu.vector_store %arg8[%c0_22, %c0_23], %11 {strides = array<i32>} : memref<2x1xf32, #tpu.memory_space<vmem>>, vector<2x1xf32>,
    %c1_i32 = arith.constant 1 : i32
    %33 = arith.cmpi eq, %arg0, %c1_i32 : i32
    %34 = arith.extui %33 : i1 to i32
    %c0_i32_24 = arith.constant 0 : i32
    %35 = arith.cmpi ne, %34, %c0_i32_24 : i32
    scf.if %35 {
      %c0_25 = arith.constant 0 : index
      %c0_26 = arith.constant 0 : index
      %36 = vector.load %arg10[%c0_25, %c0_26] : memref<2x128xf32, #tpu.memory_space<vmem>>, vector<2x128xf32>
      %c0_27 = arith.constant 0 : index
      %c0_28 = arith.constant 0 : index
      %37 = vector.load %arg9[%c0_27, %c0_28] : memref<2x1xf32, #tpu.memory_space<vmem>>, vector<2x1xf32>
      %38 = tpu.reciprocal %37 : vector<2x1xf32> -> vector<2x1xf32>
      %39 = vector.broadcast %38 : vector<2x1xf32> to vector<2x128xf32>
      %40 = arith.mulf %36, %39 : vector<2x128xf32>
      %c0_29 = arith.constant 0 : index
      %c0_30 = arith.constant 0 : index
      %41 = vector.load %arg6[%c0_29, %c0_30] : memref<2x128xf32, #tpu.memory_space<vmem>>, vector<2x128xf32>
      tpu.vector_store %arg6[%c0_29, %c0_30], %40 {strides = array<i32>} : memref<2x128xf32, #tpu.memory_space<vmem>>, vector<2x128xf32>,
      %c0_31 = arith.constant 0 : index
      %c0_32 = arith.constant 0 : index
      %c0_33 = arith.constant 0 : index
      %42 = vector.load %arg4[%c0_31, %c0_32, %c0_33] : memref<2x2x128xf32, #tpu.memory_space<vmem>>, vector<2x2x128xf32>
      %43 = vector.shape_cast %40 : vector<2x128xf32> to vector<1x2x128xf32>
      %44 = vector.broadcast %43 : vector<1x2x128xf32> to vector<2x2x128xf32>
      %45 = arith.mulf %42, %44 : vector<2x2x128xf32>
      %cst_34 = arith.constant dense<0.000000e+00> : vector<2x2xf32>
      %46 = vector.multi_reduction <add>, %45, %cst_34 [2] : vector<2x2x128xf32> to vector<2x2xf32>
      %cst_35 = arith.constant dense<0.000000e+00> : vector<2xf32>
      %47 = vector.multi_reduction <add>, %46, %cst_35 [1] : vector<2x2xf32> to vector<2xf32>
      %48 = vector.shape_cast %47 : vector<2xf32> to vector<1x2xf32>
      %c0_36 = arith.constant 0 : index
      %c0_37 = arith.constant 0 : index
      %49 = vector.load %arg5[%c0_36, %c0_37] : memref<1x2xf32, #tpu.memory_space<vmem>>, vector<1x2xf32>
      %50 = arith.addf %48, %49 : vector<1x2xf32>
      %c0_38 = arith.constant 0 : index
      %c0_39 = arith.constant 0 : index
      %51 = vector.load %arg7[%c0_38, %c0_39] : memref<1x2xf32, #tpu.memory_space<vmem>>, vector<1x2xf32>
      tpu.vector_store %arg7[%c0_38, %c0_39], %50 {strides = array<i32>} : memref<1x2xf32, #tpu.memory_space<vmem>>, vector<1x2xf32>,
    } else {
    }
    return
  }
  func.func @transform_0(%arg0: i32) -> (i32, i32) {
    %c0_i32 = arith.constant 0 : i32
    %c0_i32_0 = arith.constant 0 : i32
    %c0_i32_1 = arith.constant 0 : i32
    return %c0_i32, %c0_i32_0 : i32, i32
  }
  func.func @transform_1(%arg0: i32) -> (i32, i32) {
    %c0_i32 = arith.constant 0 : i32
    %c0_i32_0 = arith.constant 0 : i32
    return %arg0, %c0_i32 : i32, i32
  }
  func.func @transform_2(%arg0: i32) -> (i32, i32) {
    %c0_i32 = arith.constant 0 : i32
    %c0_i32_0 = arith.constant 0 : i32
    return %arg0, %c0_i32 : i32, i32
  }
  func.func @transform_3(%arg0: i32) -> (i32, i32, i32) {
    %c0_i32 = arith.constant 0 : i32
    %c0_i32_0 = arith.constant 0 : i32
    %c0_i32_1 = arith.constant 0 : i32
    %c0_i32_2 = arith.constant 0 : i32
    return %c0_i32, %c0_i32_0, %c0_i32_1 : i32, i32, i32
  }
  func.func @transform_4(%arg0: i32) -> (i32, i32) {
    %c0_i32 = arith.constant 0 : i32
    %c0_i32_0 = arith.constant 0 : i32
    %c0_i32_1 = arith.constant 0 : i32
    return %c0_i32, %c0_i32_0 : i32, i32
  }
  func.func @transform_5(%arg0: i32) -> (i32, i32) {
    %c0_i32 = arith.constant 0 : i32
    %c0_i32_0 = arith.constant 0 : i32
    %c0_i32_1 = arith.constant 0 : i32
    return %c0_i32, %c0_i32_0 : i32, i32
  }
  func.func @transform_6(%arg0: i32) -> (i32, i32) {
    %c0_i32 = arith.constant 0 : i32
    %c0_i32_0 = arith.constant 0 : i32
    %c0_i32_1 = arith.constant 0 : i32
    return %c0_i32, %c0_i32_0 : i32, i32
  }
}

</mosaic_0001>

<llo_original>
// kernel: dsmil_forward.3
$region0: #{dsmil_forward.3}
  #allocation0 [shape = 'u32[]', space=smem, size = 0x4, offset = 0x4, fixed_abs, tag = 'smem constant byte address 0x4 - core index']
  #allocation1 [shape = 'u32[144,128]{1,0:T(1,128)}', space=vmem, size = 0x12000, scoped, tag = 'internal scratch']
  #allocation2 [shape = 'f32[2,1]{1,0:T(2,128)}', space=vmem, size = 0x400, scoped, tag = 'scratch operand']
  #allocation3 [shape = 'f32[2,1]{1,0:T(2,128)}', space=vmem, size = 0x400, scoped, tag = 'scratch operand']
  #allocation4 [shape = 'f32[2,128]{1,0:T(2,128)}', space=vmem, size = 0x400, scoped, tag = 'scratch operand']
  %s0 = inlined_call_operand.vmem [shape: bf16[2,128], index: 0, kind: input, shape index: {}]
  %s1 = inlined_call_operand.vmem [shape: bf16[256,128], index: 1, kind: input, shape index: {}]
  %s2 = inlined_call_operand.vmem [shape: bf16[256,128], index: 2, kind: input, shape index: {}]
  %s3 = inlined_call_operand.vmem [shape: f32[2,2,128], index: 3, kind: input, shape index: {}]
  %s4 = inlined_call_operand.vmem [shape: f32[1,2], index: 4, kind: input, shape index: {}]
  %s5 = inlined_call_operand.hbm [shape: f32[2,128], index: 5, kind: output, shape index: {0}]
  %s6 = inlined_call_operand.hbm [shape: f32[1,2], index: 6, kind: output, shape index: {1}]
  %7 = xla_tuple %s5, %s6
  %s8 = sld [smem:[#allocation0]]
  $region69: #{dsmil_forward.3} parent=0
    _
  %s10 = ssub.s32 1, %s8
  %s11 = scalar_select 0, %s10, %s8
  $region1: #{dsmil_forward.3} parent=0
    #allocation5 [shape = 'u8[1024]{0}', space=vmem, size = 0x400, scoped, tag = 'output window, operand 0, single buffered']
    #allocation6 [shape = 's32[2]{0}', space=sflag, size = 0x8, scoped, tag = 'scoped memory for dsmil_forward.3']
    #allocation7 [shape = 'u8[512]{0}', space=vmem, size = 0x400, scoped, tag = 'output window, operand 1, single buffered']
    #allocation8 [shape = 's32[1]{0}', space=sflag, size = 0x4, scoped, tag = 'scoped memory for dsmil_forward.3']
    %12 = vsyncpa [#allocation6], 0
    %13 = vsyncpa [#allocation8], 0
    loop: start=0, step=1, limit=4
    $region2: #{dsmil_forward.3} parent=1 // loop_pre_header
      _
    $region3: #{dsmil_forward.3} parent=1 // loop_header
      %s15 = sphi 0, %s19
      %p16 = scmp.ge.s32.totalorder %s15, 4
      %s23 = sphi 0, %s23
      %s25 = sphi 0, %s23
      %s26 = sphi 0, %s25
      %s40 = sphi 0, %s26
      %s46 = sphi 0, %s48
      %s49 = sphi 0, %s46
      %s50 = sphi 0, %s49
      %s66 = sphi 0, %s50
      %s72 = sphi 0, %s74
      %s75 = sphi 0, %s72
      %s76 = sphi 0, %s75
      %s92 = sphi 0, %s76
      %s96 = sphi 0, %s96
      %s98 = sphi 0, %s96
      %s99 = sphi 0, %s98
      %s113 = sphi 0, %s99
      %s117 = sphi 0, %s117
      %s119 = sphi 0, %s117
      %s120 = sphi 0, %s119
      %s134 = sphi 0, %s120
      %s138 = sphi 0, %s138
      %s140 = sphi 0, %s138
      %s141 = sphi 0, %s140
      %s155 = sphi 0, %s141
      %s159 = sphi 0, %s159
      %s161 = sphi 0, %s159
      %s162 = sphi 0, %s161
      %s176 = sphi 0, %s162
    $region4: #{dsmil_forward.3} parent=1 // loop_header_branch
      %18 = sbr.rel (%p16) target = $region8
    $region5: #{dsmil_forward.3} parent=1 // loop_body
      %s20 = ssub.s32 %s15, 1
      %s21 = ssub.s32 %s15, 2
      %s22 = sadd.s32 %s15, 1
      %s24 = sadd.s32 %s23, 1
      %p27 = scmp.eq.s32.totalorder %s15, 1
      %p28 = scmp.ne.s32.totalorder %s23, %s25
      %p29 = scmp.eq.s32.totalorder %s15, 0
      %p30 = por %p28, %p29
      %p31 = scmp.ne.s32.totalorder %s23, %s25
      %p32 = scmp.eq.s32.totalorder %s20, 1
      %p33 = por %p31, %p32
      %p34 = scmp.ne.s32.totalorder %s25, %s26
      %p35 = scmp.eq.s32.totalorder %s20, 0
      %p36 = por %p34, %p35
      %p37 = scmp.ne.s32.totalorder %s25, %s26
      %p38 = scmp.eq.s32.totalorder %s21, 1
      %p39 = por %p37, %p38
      %p41 = scmp.ne.s32.totalorder %s26, %s40
      %p42 = scmp.eq.s32.totalorder %s21, 0
      %p43 = por %p41, %p42
      %s44 = ssub.s32 %s15, %s22
      %p45 = scmp.eq.s32.totalorder %s44, 0
      %s47 = sadd.s32 %s46, 1
      %s48 = scalar_select %p45, %s46, %s47
      %p51 = pneg %p45
      %p52 = scmp.eq.s32.totalorder %s15, 1
      %p53 = por %p51, %p52
      %p54 = scmp.ne.s32.totalorder %s46, %s49
      %p55 = scmp.eq.s32.totalorder %s15, 0
      %p56 = por %p54, %p55
      %p57 = scmp.ne.s32.totalorder %s46, %s49
      %p58 = scmp.eq.s32.totalorder %s20, 1
      %p59 = por %p57, %p58
      %p60 = scmp.ne.s32.totalorder %s49, %s50
      %p61 = scmp.eq.s32.totalorder %s20, 0
      %p62 = por %p60, %p61
      %p63 = scmp.ne.s32.totalorder %s49, %s50
      %p64 = scmp.eq.s32.totalorder %s21, 1
      %p65 = por %p63, %p64
      %p67 = scmp.ne.s32.totalorder %s50, %s66
      %p68 = scmp.eq.s32.totalorder %s21, 0
      %p69 = por %p67, %p68
      %s70 = ssub.s32 %s15, %s22
      %p71 = scmp.eq.s32.totalorder %s70, 0
      %s73 = sadd.s32 %s72, 1
      %s74 = scalar_select %p71, %s72, %s73
      %p77 = pneg %p71
      %p78 = scmp.eq.s32.totalorder %s15, 1
      %p79 = por %p77, %p78
      %p80 = scmp.ne.s32.totalorder %s72, %s75
      %p81 = scmp.eq.s32.totalorder %s15, 0
      %p82 = por %p80, %p81
      %p83 = scmp.ne.s32.totalorder %s72, %s75
      %p84 = scmp.eq.s32.totalorder %s20, 1
      %p85 = por %p83, %p84
      %p86 = scmp.ne.s32.totalorder %s75, %s76
      %p87 = scmp.eq.s32.totalorder %s20, 0
      %p88 = por %p86, %p87
      %p89 = scmp.ne.s32.totalorder %s75, %s76
      %p90 = scmp.eq.s32.totalorder %s21, 1
      %p91 = por %p89, %p90
      %p93 = scmp.ne.s32.totalorder %s76, %s92
      %p94 = scmp.eq.s32.totalorder %s21, 0
      %p95 = por %p93, %p94
      %s97 = sadd.s32 %s96, 1
      %p100 = scmp.eq.s32.totalorder %s15, 1
      %p101 = scmp.ne.s32.totalorder %s96, %s98
      %p102 = scmp.eq.s32.totalorder %s15, 0
      %p103 = por %p101, %p102
      %p104 = scmp.ne.s32.totalorder %s96, %s98
      %p105 = scmp.eq.s32.totalorder %s20, 1
      %p106 = por %p104, %p105
      %p107 = scmp.ne.s32.totalorder %s98, %s99
      %p108 = scmp.eq.s32.totalorder %s20, 0
      %p109 = por %p107, %p108
      %p110 = scmp.ne.s32.totalorder %s98, %s99
      %p111 = scmp.eq.s32.totalorder %s21, 1
      %p112 = por %p110, %p111
      %p114 = scmp.ne.s32.totalorder %s99, %s113
      %p115 = scmp.eq.s32.totalorder %s21, 0
      %p116 = por %p114, %p115
      %s118 = sadd.s32 %s117, 1
      %p121 = scmp.eq.s32.totalorder %s15, 1
      %p122 = scmp.ne.s32.totalorder %s117, %s119
      %p123 = scmp.eq.s32.totalorder %s15, 0
      %p124 = por %p122, %p123
      %p125 = scmp.ne.s32.totalorder %s117, %s119
      %p126 = scmp.eq.s32.totalorder %s20, 1
      %p127 = por %p125, %p126
      %p128 = scmp.ne.s32.totalorder %s119, %s120
      %p129 = scmp.eq.s32.totalorder %s20, 0
      %p130 = por %p128, %p129
      %p131 = scmp.ne.s32.totalorder %s119, %s120
      %p132 = scmp.eq.s32.totalorder %s21, 1
      %p133 = por %p131, %p132
      %p135 = scmp.ne.s32.totalorder %s120, %s134
      %p136 = scmp.eq.s32.totalorder %s21, 0
      %p137 = por %p135, %p136
      %s139 = sadd.s32 %s138, 1
      %p142 = scmp.eq.s32.totalorder %s15, 1
      %p143 = scmp.ne.s32.totalorder %s138, %s140
      %p144 = scmp.eq.s32.totalorder %s15, 0
      %p145 = por %p143, %p144
      %p146 = scmp.ne.s32.totalorder %s138, %s140
      %p147 = scmp.eq.s32.totalorder %s20, 1
      %p148 = por %p146, %p147
      %p149 = scmp.ne.s32.totalorder %s140, %s141
      %p150 = scmp.eq.s32.totalorder %s20, 0
      %p151 = por %p149, %p150
      %p152 = scmp.ne.s32.totalorder %s140, %s141
      %p153 = scmp.eq.s32.totalorder %s21, 1
      %p154 = por %p152, %p153
      %p156 = scmp.ne.s32.totalorder %s141, %s155
      %p157 = scmp.eq.s32.totalorder %s21, 0
      %p158 = por %p156, %p157
      %s160 = sadd.s32 %s159, 1
      %p163 = scmp.eq.s32.totalorder %s15, 1
      %p164 = scmp.ne.s32.totalorder %s159, %s161
      %p165 = scmp.eq.s32.totalorder %s15, 0
      %p166 = por %p164, %p165
      %p167 = scmp.ne.s32.totalorder %s159, %s161
      %p168 = scmp.eq.s32.totalorder %s20, 1
      %p169 = por %p167, %p168
      %p170 = scmp.ne.s32.totalorder %s161, %s162
      %p171 = scmp.eq.s32.totalorder %s20, 0
      %p172 = por %p170, %p171
      %p173 = scmp.ne.s32.totalorder %s161, %s162
      %p174 = scmp.eq.s32.totalorder %s21, 1
      %p175 = por %p173, %p174
      %p177 = scmp.ne.s32.totalorder %s162, %s176
      %p178 = scmp.eq.s32.totalorder %s21, 0
      %p179 = por %p177, %p178
      %p180 = scmp.le.s32.totalorder 1, %s15
      %p181 = scmp.lt.s32.totalorder %s15, 3
      %p182 = pnand %p180, %p181
      %p183 = pneg %p182
      // Predicated region
      $region9: #{dsmil_forward.3} parent=5 // pred_check
        _
      $region10: #{dsmil_forward.3} parent=5 // pred_check_branch
        %185 = sbr.rel (%p182) target = $region12
      $region11: #{dsmil_forward.3} parent=5 // pred_region
        %s186 = ssub.s32 %s15, 1
        // Predicated region
        $region13: #{dsmil_forward.3} parent=11 // pred_check
          %p187 = pneg %p36
        $region14: #{dsmil_forward.3} parent=11 // pred_check_branch
          %189 = sbr.rel (%p187) target = $region16
        $region15: #{dsmil_forward.3} parent=11 // pred_region
          _
        $region16: #{dsmil_forward.3} parent=11 // pred_fallthru
          _
        // Predicated region
        $region17: #{dsmil_forward.3} parent=11 // pred_check
          %p190 = pneg %p109
        $region18: #{dsmil_forward.3} parent=11 // pred_check_branch
          %192 = sbr.rel (%p190) target = $region20
        $region19: #{dsmil_forward.3} parent=11 // pred_region
          _
        $region20: #{dsmil_forward.3} parent=11 // pred_fallthru
          _
        // Predicated region
        $region21: #{dsmil_forward.3} parent=11 // pred_check
          %p193 = pneg %p130
        $region22: #{dsmil_forward.3} parent=11 // pred_check_branch
          %195 = sbr.rel (%p193) target = $region24
        $region23: #{dsmil_forward.3} parent=11 // pred_region
          _
        $region24: #{dsmil_forward.3} parent=11 // pred_fallthru
          _
      $region12: #{dsmil_forward.3} parent=5 // pred_fallthru
        _
      %p196 = scmp.lt.s32.totalorder %s15, 2
      // Predicated region
      $region25: #{dsmil_forward.3} parent=5 // pred_check
        %p197 = pneg %p196
      $region26: #{dsmil_forward.3} parent=5 // pred_check_branch
        %199 = sbr.rel (%p197) target = $region28
      $region27: #{dsmil_forward.3} parent=5 // pred_region
        // Predicated region
        $region29: #{dsmil_forward.3} parent=27 // pred_check
          %p200 = pneg %p56
        $region30: #{dsmil_forward.3} parent=27 // pred_check_branch
          %202 = sbr.rel (%p200) target = $region32
        $region31: #{dsmil_forward.3} parent=27 // pred_region
          %s203 = smul.u32 16, %s15
          %p204 = scmp.lt.s32.totalorder %s203, 31
          %s205 = scalar_select %p204, %s203, 31
          %s206 = smul.addr %s205, 4
          %s207 = scalar_lea.vmem %s1, %s206
          %s208 = smul.u32 16, %s15
        $region32: #{dsmil_forward.3} parent=27 // pred_fallthru
          _
        // Predicated region
        $region33: #{dsmil_forward.3} parent=27 // pred_check
          %p209 = pneg %p82
        $region34: #{dsmil_forward.3} parent=27 // pred_check_branch
          %211 = sbr.rel (%p209) target = $region36
        $region35: #{dsmil_forward.3} parent=27 // pred_region
          %s212 = smul.u32 16, %s15
          %p213 = scmp.lt.s32.totalorder %s212, 31
          %s214 = scalar_select %p213, %s212, 31
          %s215 = smul.addr %s214, 4
          %s216 = scalar_lea.vmem %s2, %s215
          %s217 = smul.u32 16, %s15
        $region36: #{dsmil_forward.3} parent=27 // pred_fallthru
          _
      $region28: #{dsmil_forward.3} parent=5 // pred_fallthru
        _
      %p218 = scmp.le.s32.totalorder 1, %s15
      %p219 = scmp.lt.s32.totalorder %s15, 3
      %p220 = pnand %p218, %p219
      %p221 = pneg %p220
      // Predicated region
      $region37: #{dsmil_forward.3} parent=5 // pred_check
        _
      $region38: #{dsmil_forward.3} parent=5 // pred_check_branch
        %223 = sbr.rel (%p220) target = $region40
      $region39: #{dsmil_forward.3} parent=5 // pred_region
        %s224 = ssub.s32 %s15, 1
        %p225 = pneg %p36
        %p226 = pneg %p33
        %s227 = smul.u32 16, %s20
        %p228 = scmp.lt.s32.totalorder %s227, 31
        %s229 = scalar_select %p228, %s227, 31
        %s230 = smul.addr %s229, 4
        %s231 = scalar_lea.vmem %s1, %s230
        %p232 = pneg %p62
        %p233 = pneg %p59
        %s234 = smul.u32 16, %s20
        %p235 = scmp.lt.s32.totalorder %s234, 31
        %s236 = scalar_select %p235, %s234, 31
        %s237 = smul.addr %s236, 4
        %s238 = scalar_lea.vmem %s2, %s237
        %p239 = pneg %p88
        %p240 = pneg %p85
        %p241 = pneg %p109
        %p242 = pneg %p106
        %p243 = pneg %p130
        %p244 = pneg %p127
        %p245 = pneg %p151
        %p246 = pneg %p148
        %p247 = pneg %p172
        %p248 = pneg %p169
        %s249 = smul.u32 16, %s20
        %p250 = scmp.lt.s32.totalorder %s249, 31
        %s251 = scalar_select %p250, %s249, 31
        %s252 = smul.addr %s251, 4
        %s253 = scalar_lea.vmem %s1, %s252
        %s254 = smul.u32 16, %s20
        %s255 = smul.u32 16, %s20
        %p256 = scmp.lt.s32.totalorder %s255, 31
        %s257 = scalar_select %p256, %s255, 31
        %s258 = smul.addr %s257, 4
        %s259 = scalar_lea.vmem %s2, %s258
        %s260 = smul.u32 16, %s20
        %p262 = scmp.eq.s32.totalorder %s20, 0
        // Predicated region
        $region41: #{dsmil_forward.3} parent=39 // pred_check
          %p263 = pneg %p262
        $region42: #{dsmil_forward.3} parent=39 // pred_check_branch
          %265 = sbr.rel (%p263) target = $region44
        $region43: #{dsmil_forward.3} parent=39 // pred_region
          %vm266 = vcmask 1024
          %267 = vst.msk [vmem:[#allocation2] sm:$0x3] %vm266, -inf
          %268 = vst.msk [vmem:[#allocation3] sm:$0x3] %vm266, 0.0
          %269 = vst [vmem:[#allocation4] sm:$0x3] 0.0
        $region44: #{dsmil_forward.3} parent=39 // pred_fallthru
          _
        %v270 = vld [vmem:[%s0] sm:$0x1]
        %v271 = vld [vmem:[%s253] sm:$0xf]
        %v272 = vld [vmem:[%s253 + $0x4] sm:$0xf]
        %v273 = vld [vmem:[%s253 + $0x8] sm:$0xf]
        %v274 = vld [vmem:[%s253 + $0xc] sm:$0xf]
        %v275 = vld [vmem:[%s253 + $0x10] sm:$0xf]
        %v276 = vld [vmem:[%s253 + $0x14] sm:$0xf]
        %v277 = vld [vmem:[%s253 + $0x18] sm:$0xf]
        %v278 = vld [vmem:[%s253 + $0x1c] sm:$0xf]
        %v279 = vld [vmem:[%s253 + $0x20] sm:$0xf]
        %v280 = vld [vmem:[%s253 + $0x24] sm:$0xf]
        %v281 = vld [vmem:[%s253 + $0x28] sm:$0xf]
        %v282 = vld [vmem:[%s253 + $0x2c] sm:$0xf]
        %v283 = vld [vmem:[%s253 + $0x30] sm:$0xf]
        %v284 = vld [vmem:[%s253 + $0x34] sm:$0xf]
        %v285 = vld [vmem:[%s253 + $0x38] sm:$0xf]
        %v286 = vld [vmem:[%s253 + $0x3c] sm:$0xf]
        %v303 = vunpack.c.l.b16 %v271
        %v304 = vunpack.c.l.b16 %v272
        %v305 = vunpack.c.l.b16 %v273
        %v306 = vunpack.c.l.b16 %v274
        %v307 = vunpack.c.l.b16 %v275
        %v308 = vunpack.c.l.b16 %v276
        %v309 = vunpack.c.l.b16 %v277
        %v310 = vunpack.c.l.b16 %v278
        %v311 = vunpack.c.l.b16 %v279
        %v312 = vunpack.c.l.b16 %v280
        %v313 = vunpack.c.l.b16 %v281
        %v314 = vunpack.c.l.b16 %v282
        %v315 = vunpack.c.l.b16 %v283
        %v316 = vunpack.c.l.b16 %v284
        %v317 = vunpack.c.l.b16 %v285
        %v318 = vunpack.c.l.b16 %v286
        %v319 = vpack.c.b16 %v304, %v303
        %v320 = vpack.c.b16 %v306, %v305
        %v321 = vpack.c.b16 %v308, %v307
        %v322 = vpack.c.b16 %v310, %v309
        %v323 = vpack.c.b16 %v312, %v311
        %v324 = vpack.c.b16 %v314, %v313
        %v325 = vpack.c.b16 %v316, %v315
        %v326 = vpack.c.b16 %v318, %v317
        %335 = vmatprep.subr.bf16.mxu0 0
        %336 = vmatpush1.bf16.xpose.msra.mxu0 %v326
        %337 = vmatprep.subr.bf16.mxu0 0
        %338 = vmatpush1.bf16.xpose.msra.mxu0 %v325
        %339 = vmatprep.subr.bf16.mxu0 0
        %340 = vmatpush1.bf16.xpose.msra.mxu0 %v324
        %341 = vmatprep.subr.bf16.mxu0 0
        %342 = vmatpush1.bf16.xpose.msra.mxu0 %v323
        %343 = vmatprep.subr.bf16.mxu0 0
        %344 = vmatpush1.bf16.xpose.msra.mxu0 %v322
        %345 = vmatprep.subr.bf16.mxu0 0
        %346 = vmatpush1.bf16.xpose.msra.mxu0 %v321
        %347 = vmatprep.subr.bf16.mxu0 0
        %348 = vmatpush1.bf16.xpose.msra.mxu0 %v320
        %349 = vmatprep.subr.bf16.mxu0 0
        %350 = vmatpush1.bf16.xpose.msra.mxu0 %v319
        %351 = vmatprep.subr.bf16.mxu0 0
        %352 = vmatpush2.bf16.xpose.msra.mxu0 0
        %353 = vmatprep.subr.bf16.mxu0 0
        %354 = vmatpush2.bf16.xpose.msra.mxu0 0
        %355 = vmatprep.subr.bf16.mxu0 0
        %356 = vmatpush2.bf16.xpose.msra.mxu0 0
        %357 = vmatprep.subr.bf16.mxu0 0
        %358 = vmatpush2.bf16.xpose.msra.mxu0 0
        %359 = vmatprep.subr.bf16.mxu0 0
        %360 = vmatpush2.bf16.xpose.msra.mxu0 0
        %361 = vmatprep.subr.bf16.mxu0 0
        %362 = vmatpush2.bf16.xpose.msra.mxu0 0
        %363 = vmatprep.subr.bf16.mxu0 0
        %364 = vmatpush2.bf16.xpose.msra.mxu0 0
        %365 = vmatprep.subr.bf16.mxu0 0
        %366 = vmatpush2.bf16.xpose.msra.mxu0 0
        %367 = vmatprep.mubr.bf16.mxu0 0
        %368 = vmatmul.mubr.bf16.gmra.mxu0 %v270
        %v369 = vpop.f32.mrf.mxu0
        %v370 = vadd.f32 0.0, %v369
        %v371 = vpop.f32.mrf.mxu0
        %v372 = vpop.f32.mrf.mxu0
        %v373 = vpop.f32.mrf.mxu0
        %374 = vdwg.mxu0
        %v375 = vmul.f32 %v370, 0.088388346
        %v376 = vld [vmem:[#allocation2] sm:$0x3]
        %vm377 = vcmask 1041408
        %v378 = vsel %vm377, %v375, -inf
        %379 = vmax.xlane.f32.xlu0 %v378
        %v380 = vpop.xlane.xlu0 %379
        %v381 = vmax.f32 %v376, %v380
        %v382 = vsub.f32 %v376, %v381
        %v383 = vmul.f32 %v382, 1.442695
        %v384 = vpow.pop %v383
        %386 = vset.pattern.permute.xlu0 0
        %387 = vperm.xlu0 %386, %v381
        %v388 = vpop.permute.xlu0 %387
        %v390 = vsub.f32 %v375, %v388
        %v391 = vmul.f32 %v390, 1.442695
        %v392 = vpow.pop %v391
        %v393 = vld [vmem:[#allocation3] sm:$0x3]
        %v394 = vmul.f32 %v384, %v393
        %v395 = vsel %vm377, %v392, 0.0
        %396 = vadd.xlane.f32.xlu0 %v395
        %v397 = vpop.xlane.xlu0 %396
        %v398 = vadd.f32 %v394, %v397
        %vm399 = vcmask 1024
        %400 = vst.msk [vmem:[#allocation3] sm:$0x3] %vm399, %v398
        %v401 = vld [vmem:[#allocation4] sm:$0x3]
        %403 = vset.pattern.permute.xlu0 0
        %404 = vperm.xlu0 %403, %v384
        %v405 = vpop.permute.xlu0 %404
        %v407 = vmul.f32 %v405, %v401
        %v408 = vld [vmem:[%s259] sm:$0xf]
        %v409 = vld [vmem:[%s259 + $0x4] sm:$0xf]
        %v410 = vld [vmem:[%s259 + $0x8] sm:$0xf]
        %v411 = vld [vmem:[%s259 + $0xc] sm:$0xf]
        %v412 = vld [vmem:[%s259 + $0x10] sm:$0xf]
        %v413 = vld [vmem:[%s259 + $0x14] sm:$0xf]
        %v414 = vld [vmem:[%s259 + $0x18] sm:$0xf]
        %v415 = vld [vmem:[%s259 + $0x1c] sm:$0xf]
        %v416 = vld [vmem:[%s259 + $0x20] sm:$0xf]
        %v417 = vld [vmem:[%s259 + $0x24] sm:$0xf]
        %v418 = vld [vmem:[%s259 + $0x28] sm:$0xf]
        %v419 = vld [vmem:[%s259 + $0x2c] sm:$0xf]
        %v420 = vld [vmem:[%s259 + $0x30] sm:$0xf]
        %v421 = vld [vmem:[%s259 + $0x34] sm:$0xf]
        %v422 = vld [vmem:[%s259 + $0x38] sm:$0xf]
        %v423 = vld [vmem:[%s259 + $0x3c] sm:$0xf]
        %v424 = vunpack.c.l.bf16 %v408
        %v425 = vunpack.c.l.bf16 %v409
        %v426 = vunpack.c.l.bf16 %v410
        %v427 = vunpack.c.l.bf16 %v411
        %v428 = vunpack.c.l.bf16 %v412
        %v429 = vunpack.c.l.bf16 %v413
        %v430 = vunpack.c.l.bf16 %v414
        %v431 = vunpack.c.l.bf16 %v415
        %v432 = vunpack.c.l.bf16 %v416
        %v433 = vunpack.c.l.bf16 %v417
        %v434 = vunpack.c.l.bf16 %v418
        %v435 = vunpack.c.l.bf16 %v419
        %v436 = vunpack.c.l.bf16 %v420
        %v437 = vunpack.c.l.bf16 %v421
        %v438 = vunpack.c.l.bf16 %v422
        %v439 = vunpack.c.l.bf16 %v423
        %440 = vmatprep.subr.mxu0 0.0
        %441 = vmatpush1.msra.mxu0 %v439
        %442 = vmatprep.subr.mxu0 0.0
        %443 = vmatpush1.msra.mxu0 %v438
        %444 = vmatprep.subr.mxu0 0.0
        %445 = vmatpush1.msra.mxu0 %v437
        %446 = vmatprep.subr.mxu0 0.0
        %447 = vmatpush1.msra.mxu0 %v436
        %448 = vmatprep.subr.mxu0 0.0
        %449 = vmatpush1.msra.mxu0 %v435
        %450 = vmatprep.subr.mxu0 0.0
        %451 = vmatpush1.msra.mxu0 %v434
        %452 = vmatprep.subr.mxu0 0.0
        %453 = vmatpush1.msra.mxu0 %v433
        %454 = vmatprep.subr.mxu0 0.0
        %455 = vmatpush1.msra.mxu0 %v432
        %456 = vmatprep.subr.mxu0 0.0
        %457 = vmatpush1.msra.mxu0 %v431
        %458 = vmatprep.subr.mxu0 0.0
        %459 = vmatpush1.msra.mxu0 %v430
        %460 = vmatprep.subr.mxu0 0.0
        %461 = vmatpush1.msra.mxu0 %v429
        %462 = vmatprep.subr.mxu0 0.0
        %463 = vmatpush1.msra.mxu0 %v428
        %464 = vmatprep.subr.mxu0 0.0
        %465 = vmatpush1.msra.mxu0 %v427
        %466 = vmatprep.subr.mxu0 0.0
        %467 = vmatpush1.msra.mxu0 %v426
        %468 = vmatprep.subr.mxu0 0.0
        %469 = vmatpush1.msra.mxu0 %v425
        %470 = vmatprep.subr.mxu0 0.0
        %471 = vmatpush1.msra.mxu0 %v424
        %472 = vmatprep.subr.mxu0 0.0
        %473 = vmatpush2.msra.mxu0 0.0
        %474 = vmatprep.subr.mxu0 0.0
        %475 = vmatpush2.msra.mxu0 0.0
        %476 = vmatprep.subr.mxu0 0.0
        %477 = vmatpush2.msra.mxu0 0.0
        %478 = vmatprep.subr.mxu0 0.0
        %479 = vmatpush2.msra.mxu0 0.0
        %480 = vmatprep.subr.mxu0 0.0
        %481 = vmatpush2.msra.mxu0 0.0
        %482 = vmatprep.subr.mxu0 0.0
        %483 = vmatpush2.msra.mxu0 0.0
        %484 = vmatprep.subr.mxu0 0.0
        %485 = vmatpush2.msra.mxu0 0.0
        %486 = vmatprep.subr.mxu0 0.0
        %487 = vmatpush2.msra.mxu0 0.0
        %488 = vmatprep.subr.mxu0 0.0
        %489 = vmatpush2.msra.mxu0 0.0
        %490 = vmatprep.subr.mxu0 0.0
        %491 = vmatpush2.msra.mxu0 0.0
        %492 = vmatprep.subr.mxu0 0.0
        %493 = vmatpush2.msra.mxu0 0.0
        %494 = vmatprep.subr.mxu0 0.0
        %495 = vmatpush2.msra.mxu0 0.0
        %496 = vmatprep.subr.mxu0 0.0
        %497 = vmatpush2.msra.mxu0 0.0
        %498 = vmatprep.subr.mxu0 0.0
        %499 = vmatpush2.msra.mxu0 0.0
        %500 = vmatprep.subr.mxu0 0.0
        %501 = vmatpush2.msra.mxu0 0.0
        %502 = vmatprep.subr.mxu0 0.0
        %503 = vmatpush2.msra.mxu0 0.0
        %504 = vmatprep.mubr.f32.mxu0 0.0
        %505 = vmatmul.mubr.f32.gmra.mxu0 %v392
        %v506 = vpop.f32.mrf.mxu0
        %v507 = vadd.f32 0.0, %v506
        %v508 = vpop.f32.mrf.mxu0
        %509 = vdwg.mxu0
        %v510 = vadd.f32 %v407, %v507
        %511 = vst [vmem:[#allocation4] sm:$0x3] %v510
        %512 = vst.msk [vmem:[#allocation2] sm:$0x3] %vm399, %v381
        %p513 = scmp.eq.s32.totalorder %s20, 1
        // Predicated region
        $region45: #{dsmil_forward.3} parent=39 // pred_check
          %p514 = pneg %p513
        $region46: #{dsmil_forward.3} parent=39 // pred_check_branch
          %516 = sbr.rel (%p514) target = $region48
        $region47: #{dsmil_forward.3} parent=39 // pred_region
          %v517 = vld [vmem:[#allocation4] sm:$0x3]
          %v518 = vld [vmem:[#allocation3] sm:$0x3]
          %v519 = vrcp.pop %v518
          %521 = vset.pattern.permute.xlu0 0
          %522 = vperm.xlu0 %521, %v519
          %v523 = vpop.permute.xlu0 %522
          %v525 = vmul.f32 %v517, %v523
          %526 = vst [vmem:[#allocation5] sm:$0x3] %v525
          %v527 = vld [vmem:[%s3] sm:$0x3]
          %v528 = vld [vmem:[%s3 + $0x2] sm:$0x3]
          %v529 = vmul.f32 %v527, %v525
          %v530 = vmul.f32 %v528, %v525
          %v531 = vsel %vm377, %v529, 0.0
          %532 = vadd.xlane.f32.xlu0 %v531
          %v533 = vpop.xlane.xlu0 %532
          %v534 = vsel %vm377, %v530, 0.0
          %535 = vadd.xlane.f32.xlu0 %v534
          %v536 = vpop.xlane.xlu0 %535
          %v539 = vlaneseq
          %v540 = vand.u32 %v539, 127
          %v541 = vlaneseq
          %v542 = vshrl.u32 %v541, 7
          %v543 = vsub.s32 %v540, %v542
          %v544 = vrot.slane %v533, %v543
          %v545 = vlaneseq
          %v546 = vshrl.u32 %v545, 7
          %v547 = vsub.s32 %v540, %v546
          %v548 = vrot.slane %v536, %v547
          %vm549 = vcmask 1041409
          %v550 = vsel %vm549, %v548, %v544
          %vm552 = vcmask 9216
          %v553 = vsel %vm552, %v550, 0.0
          %554 = vadd.xlane.f32.xlu0 %v553
          %v555 = vpop.xlane.xlu0 %554
          %v556 = vld [vmem:[%s4] sm:$0x1]
          %v558 = vlaneseq
          %v559 = vshrl.u32 %v558, 7
          %v560 = vsub.s32 0, %v559
          %v561 = vrot.slane %v556, %v560
          %563 = vbcast.lane.b32.xlu0 %v561, 256
          %v564 = vpop.permute.xlu0 %563
          %v566 = vadd.f32 %v555, %v564
          %568 = vset.pattern.permute.xlu0 0
          %569 = vperm.xlu0 %568, %v566
          %v570 = vpop.permute.xlu0 %569
          %v571 = vlaneseq
          %v572 = vshrl.u32 %v571, 7
          %v573 = vsub.s32 %v540, %v572
          %v574 = vrot.slane %v570, %v573
          %vm576 = vcmask 8192
          %577 = vst.msk [vmem:[#allocation7] sm:$0x1] %vm576, %v574
        $region48: #{dsmil_forward.3} parent=39 // pred_fallthru
          _
        // Predicated region
        $region49: #{dsmil_forward.3} parent=39 // pred_check
          %p578 = pneg %p148
        $region50: #{dsmil_forward.3} parent=39 // pred_check_branch
          %580 = sbr.rel (%p578) target = $region52
        $region51: #{dsmil_forward.3} parent=39 // pred_region
          %s582 = ssub.s32 32, 32
          %583 = vsyncadd [#allocation6], %s582
          %s585 = sshll.u32 [#allocation5], 4
          %s586 = int_to_ptr.vmem [resolvable:$true] %s585
          %588 = dma.vmem_to_hbm [thread:$0]  %s586, 32, %s5, [#allocation6]
        $region52: #{dsmil_forward.3} parent=39 // pred_fallthru
          _
        // Predicated region
        $region53: #{dsmil_forward.3} parent=39 // pred_check
          %p589 = pneg %p169
        $region54: #{dsmil_forward.3} parent=39 // pred_check_branch
          %591 = sbr.rel (%p589) target = $region56
        $region55: #{dsmil_forward.3} parent=39 // pred_region
          %s593 = ssub.s32 16, 16
          %594 = vsyncadd [#allocation8], %s593
          %s596 = sshll.u32 [#allocation7], 4
          %s597 = int_to_ptr.vmem [resolvable:$true] %s596
          %599 = dma.vmem_to_hbm [thread:$0]  %s597, 16, %s6, [#allocation8]
        $region56: #{dsmil_forward.3} parent=39 // pred_fallthru
          _
        // Predicated region
        $region57: #{dsmil_forward.3} parent=39 // pred_check
          %p600 = pneg %p148
        $region58: #{dsmil_forward.3} parent=39 // pred_check_branch
          %602 = sbr.rel (%p600) target = $region60
        $region59: #{dsmil_forward.3} parent=39 // pred_region
          %603 = dma.done [#allocation6], 32
        $region60: #{dsmil_forward.3} parent=39 // pred_fallthru
          _
        // Predicated region
        $region61: #{dsmil_forward.3} parent=39 // pred_check
          %p604 = pneg %p169
        $region62: #{dsmil_forward.3} parent=39 // pred_check_branch
          %606 = sbr.rel (%p604) target = $region64
        $region63: #{dsmil_forward.3} parent=39 // pred_region
          %607 = dma.done [#allocation8], 16
        $region64: #{dsmil_forward.3} parent=39 // pred_fallthru
          _
      $region40: #{dsmil_forward.3} parent=5 // pred_fallthru
        _
      %p608 = scmp.le.s32.totalorder 2, %s15
      // Predicated region
      $region65: #{dsmil_forward.3} parent=5 // pred_check
        %p609 = pneg %p608
      $region66: #{dsmil_forward.3} parent=5 // pred_check_branch
        %611 = sbr.rel (%p609) target = $region68
      $region67: #{dsmil_forward.3} parent=5 // pred_region
        %s612 = ssub.s32 %s15, 2
      $region68: #{dsmil_forward.3} parent=5 // pred_fallthru
        _
    $region6: #{dsmil_forward.3} parent=1 // loop_footer
      %s19 = sadd.s32 1, %s15
    $region7: #{dsmil_forward.3} parent=1 // loop_footer_branch
      %14 = sbr.rel target = $region3
    $region8: #{dsmil_forward.3} parent=1 // loop_exit
      _
    %613 = vsyncpa [#allocation6], 1
    %s614 = scalar_lea.sflag [#allocation6], 1
    %615 = vsyncpa %s614, 1
    %616 = vsyncpa [#allocation8], 1

// kernel: dsmil_forward.2
$region0: #{dsmil_forward.2}
  #allocation0 [shape = 'u32[]', space=smem, size = 0x4, offset = 0x4, fixed_abs, tag = 'smem constant byte address 0x4 - core index']
  #allocation1 [shape = 'u32[144,128]{1,0:T(1,128)}', space=vmem, size = 0x12000, scoped, tag = 'internal scratch']
  %s0 = inlined_call_operand.vmem [shape: bf16[256,128], index: 0, kind: input, shape index: {}]
  %s1 = inlined_call_operand.vmem [shape: bf16[2,128], index: 1, kind: input, shape index: {}]
  %s2 = inlined_call_operand.vmem [shape: f32[2,1], index: 2, kind: input, shape index: {}]
  %s3 = inlined_call_operand.vmem [shape: bf16[128,128], index: 3, kind: input, shape index: {}]
  %s4 = inlined_call_operand.vmem [shape: f32[1,128], index: 4, kind: input, shape index: {}]
  %s5 = inlined_call_operand.vmem [shape: bf16[128,128], index: 5, kind: input, shape index: {}]
  %s6 = inlined_call_operand.vmem [shape: f32[1,128], index: 6, kind: input, shape index: {}]
  %s7 = inlined_call_operand.vmem [shape: bf16[128,128], index: 7, kind: input, shape index: {}]
  %s8 = inlined_call_operand.vmem [shape: f32[1,128], index: 8, kind: input, shape index: {}]
  %s9 = inlined_call_operand.vmem [shape: f32[2,256], index: 9, kind: output, shape index: {0}]
  %s10 = inlined_call_operand.vmem [shape: bf16[256,128], index: 10, kind: output, shape index: {1}]
  %s11 = inlined_call_operand.vmem [shape: bf16[256,128], index: 11, kind: output, shape index: {2}]
  %12 = xla_tuple %s9, %s10, %s11
  %s13 = sld [smem:[#allocation0]]
  $region85: #{dsmil_forward.2} parent=0
    _
  %s15 = ssub.s32 1, %s13
  %s16 = scalar_select 0, %s15, %s13
  loop: start=0, step=1, limit=4
  $region2: #{dsmil_forward.2} parent=0 // loop_pre_header
    _
  $region3: #{dsmil_forward.2} parent=0 // loop_header
    %s18 = sphi 0, %s22
    %p19 = scmp.ge.s32.totalorder %s18, 4
    %s28 = sphi 0, %s30
    %s31 = sphi 0, %s28
    %s32 = sphi 0, %s31
    %s48 = sphi 0, %s32
    %s52 = sphi 0, %s52
    %s54 = sphi 0, %s52
    %s55 = sphi 0, %s54
    %s69 = sphi 0, %s55
    %s73 = sphi 0, %s73
    %s75 = sphi 0, %s73
    %s76 = sphi 0, %s75
    %s90 = sphi 0, %s76
    %s94 = sphi 0, %s94
    %s96 = sphi 0, %s94
    %s97 = sphi 0, %s96
    %s111 = sphi 0, %s97
    %s115 = sphi 0, %s115
    %s117 = sphi 0, %s115
    %s118 = sphi 0, %s117
    %s132 = sphi 0, %s118
    %s136 = sphi 0, %s136
    %s138 = sphi 0, %s136
    %s139 = sphi 0, %s138
    %s153 = sphi 0, %s139
    %s157 = sphi 0, %s157
    %s159 = sphi 0, %s157
    %s160 = sphi 0, %s159
    %s174 = sphi 0, %s160
    %s178 = sphi 0, %s178
    %s180 = sphi 0, %s178
    %s181 = sphi 0, %s180
    %s195 = sphi 0, %s181
    %s199 = sphi 0, %s199
    %s201 = sphi 0, %s199
    %s202 = sphi 0, %s201
    %s216 = sphi 0, %s202
    %s222 = sphi 0, %s224
    %s225 = sphi 0, %s222
    %s226 = sphi 0, %s225
    %s242 = sphi 0, %s226
    %s248 = sphi 0, %s250
    %s251 = sphi 0, %s248
    %s252 = sphi 0, %s251
    %s268 = sphi 0, %s252
    %s274 = sphi 0, %s276
    %s277 = sphi 0, %s274
    %s278 = sphi 0, %s277
    %s294 = sphi 0, %s278
  $region4: #{dsmil_forward.2} parent=0 // loop_header_branch
    %21 = sbr.rel (%p19) target = $region8
  $region5: #{dsmil_forward.2} parent=0 // loop_body
    %s23 = ssub.s32 %s18, 1
    %s24 = ssub.s32 %s18, 2
    %s25 = sadd.s32 %s18, 1
    %s26 = ssub.s32 %s18, %s25
    %p27 = scmp.eq.s32.totalorder %s26, 0
    %s29 = sadd.s32 %s28, 1
    %s30 = scalar_select %p27, %s28, %s29
    %p33 = pneg %p27
    %p34 = scmp.eq.s32.totalorder %s18, 1
    %p35 = por %p33, %p34
    %p36 = scmp.ne.s32.totalorder %s28, %s31
    %p37 = scmp.eq.s32.totalorder %s18, 0
    %p38 = por %p36, %p37
    %p39 = scmp.ne.s32.totalorder %s28, %s31
    %p40 = scmp.eq.s32.totalorder %s23, 1
    %p41 = por %p39, %p40
    %p42 = scmp.ne.s32.totalorder %s31, %s32
    %p43 = scmp.eq.s32.totalorder %s23, 0
    %p44 = por %p42, %p43
    %p45 = scmp.ne.s32.totalorder %s31, %s32
    %p46 = scmp.eq.s32.totalorder %s24, 1
    %p47 = por %p45, %p46
    %p49 = scmp.ne.s32.totalorder %s32, %s48
    %p50 = scmp.eq.s32.totalorder %s24, 0
    %p51 = por %p49, %p50
    %s53 = sadd.s32 %s52, 1
    %p56 = scmp.eq.s32.totalorder %s18, 1
    %p57 = scmp.ne.s32.totalorder %s52, %s54
    %p58 = scmp.eq.s32.totalorder %s18, 0
    %p59 = por %p57, %p58
    %p60 = scmp.ne.s32.totalorder %s52, %s54
    %p61 = scmp.eq.s32.totalorder %s23, 1
    %p62 = por %p60, %p61
    %p63 = scmp.ne.s32.totalorder %s54, %s55
    %p64 = scmp.eq.s32.totalorder %s23, 0
    %p65 = por %p63, %p64
    %p66 = scmp.ne.s32.totalorder %s54, %s55
    %p67 = scmp.eq.s32.totalorder %s24, 1
    %p68 = por %p66, %p67
    %p70 = scmp.ne.s32.totalorder %s55, %s69
    %p71 = scmp.eq.s32.totalorder %s24, 0
    %p72 = por %p70, %p71
    %s74 = sadd.s32 %s73, 1
    %p77 = scmp.eq.s32.totalorder %s18, 1
    %p78 = scmp.ne.s32.totalorder %s73, %s75
    %p79 = scmp.eq.s32.totalorder %s18, 0
    %p80 = por %p78, %p79
    %p81 = scmp.ne.s32.totalorder %s73, %s75
    %p82 = scmp.eq.s32.totalorder %s23, 1
    %p83 = por %p81, %p82
    %p84 = scmp.ne.s32.totalorder %s75, %s76
    %p85 = scmp.eq.s32.totalorder %s23, 0
    %p86 = por %p84, %p85
    %p87 = scmp.ne.s32.totalorder %s75, %s76
    %p88 = scmp.eq.s32.totalorder %s24, 1
    %p89 = por %p87, %p88
    %p91 = scmp.ne.s32.totalorder %s76, %s90
    %p92 = scmp.eq.s32.totalorder %s24, 0
    %p93 = por %p91, %p92
    %s95 = sadd.s32 %s94, 1
    %p98 = scmp.eq.s32.totalorder %s18, 1
    %p99 = scmp.ne.s32.totalorder %s94, %s96
    %p100 = scmp.eq.s32.totalorder %s18, 0
    %p101 = por %p99, %p100
    %p102 = scmp.ne.s32.totalorder %s94, %s96
    %p103 = scmp.eq.s32.totalorder %s23, 1
    %p104 = por %p102, %p103
    %p105 = scmp.ne.s32.totalorder %s96, %s97
    %p106 = scmp.eq.s32.totalorder %s23, 0
    %p107 = por %p105, %p106
    %p108 = scmp.ne.s32.totalorder %s96, %s97
    %p109 = scmp.eq.s32.totalorder %s24, 1
    %p110 = por %p108, %p109
    %p112 = scmp.ne.s32.totalorder %s97, %s111
    %p113 = scmp.eq.s32.totalorder %s24, 0
    %p114 = por %p112, %p113
    %s116 = sadd.s32 %s115, 1
    %p119 = scmp.eq.s32.totalorder %s18, 1
    %p120 = scmp.ne.s32.totalorder %s115, %s117
    %p121 = scmp.eq.s32.totalorder %s18, 0
    %p122 = por %p120, %p121
    %p123 = scmp.ne.s32.totalorder %s115, %s117
    %p124 = scmp.eq.s32.totalorder %s23, 1
    %p125 = por %p123, %p124
    %p126 = scmp.ne.s32.totalorder %s117, %s118
    %p127 = scmp.eq.s32.totalorder %s23, 0
    %p128 = por %p126, %p127
    %p129 = scmp.ne.s32.totalorder %s117, %s118
    %p130 = scmp.eq.s32.totalorder %s24, 1
    %p131 = por %p129, %p130
    %p133 = scmp.ne.s32.totalorder %s118, %s132
    %p134 = scmp.eq.s32.totalorder %s24, 0
    %p135 = por %p133, %p134
    %s137 = sadd.s32 %s136, 1
    %p140 = scmp.eq.s32.totalorder %s18, 1
    %p141 = scmp.ne.s32.totalorder %s136, %s138
    %p142 = scmp.eq.s32.totalorder %s18, 0
    %p143 = por %p141, %p142
    %p144 = scmp.ne.s32.totalorder %s136, %s138
    %p145 = scmp.eq.s32.totalorder %s23, 1
    %p146 = por %p144, %p145
    %p147 = scmp.ne.s32.totalorder %s138, %s139
    %p148 = scmp.eq.s32.totalorder %s23, 0
    %p149 = por %p147, %p148
    %p150 = scmp.ne.s32.totalorder %s138, %s139
    %p151 = scmp.eq.s32.totalorder %s24, 1
    %p152 = por %p150, %p151
    %p154 = scmp.ne.s32.totalorder %s139, %s153
    %p155 = scmp.eq.s32.totalorder %s24, 0
    %p156 = por %p154, %p155
    %s158 = sadd.s32 %s157, 1
    %p161 = scmp.eq.s32.totalorder %s18, 1
    %p162 = scmp.ne.s32.totalorder %s157, %s159
    %p163 = scmp.eq.s32.totalorder %s18, 0
    %p164 = por %p162, %p163
    %p165 = scmp.ne.s32.totalorder %s157, %s159
    %p166 = scmp.eq.s32.totalorder %s23, 1
    %p167 = por %p165, %p166
    %p168 = scmp.ne.s32.totalorder %s159, %s160
    %p169 = scmp.eq.s32.totalorder %s23, 0
    %p170 = por %p168, %p169
    %p171 = scmp.ne.s32.totalorder %s159, %s160
    %p172 = scmp.eq.s32.totalorder %s24, 1
    %p173 = por %p171, %p172
    %p175 = scmp.ne.s32.totalorder %s160, %s174
    %p176 = scmp.eq.s32.totalorder %s24, 0
    %p177 = por %p175, %p176
    %s179 = sadd.s32 %s178, 1
    %p182 = scmp.eq.s32.totalorder %s18, 1
    %p183 = scmp.ne.s32.totalorder %s178, %s180
    %p184 = scmp.eq.s32.totalorder %s18, 0
    %p185 = por %p183, %p184
    %p186 = scmp.ne.s32.totalorder %s178, %s180
    %p187 = scmp.eq.s32.totalorder %s23, 1
    %p188 = por %p186, %p187
    %p189 = scmp.ne.s32.totalorder %s180, %s181
    %p190 = scmp.eq.s32.totalorder %s23, 0
    %p191 = por %p189, %p190
    %p192 = scmp.ne.s32.totalorder %s180, %s181
    %p193 = scmp.eq.s32.totalorder %s24, 1
    %p194 = por %p192, %p193
    %p196 = scmp.ne.s32.totalorder %s181, %s195
    %p197 = scmp.eq.s32.totalorder %s24, 0
    %p198 = por %p196, %p197
    %s200 = sadd.s32 %s199, 1
    %p203 = scmp.eq.s32.totalorder %s18, 1
    %p204 = scmp.ne.s32.totalorder %s199, %s201
    %p205 = scmp.eq.s32.totalorder %s18, 0
    %p206 = por %p204, %p205
    %p207 = scmp.ne.s32.totalorder %s199, %s201
    %p208 = scmp.eq.s32.totalorder %s23, 1
    %p209 = por %p207, %p208
    %p210 = scmp.ne.s32.totalorder %s201, %s202
    %p211 = scmp.eq.s32.totalorder %s23, 0
    %p212 = por %p210, %p211
    %p213 = scmp.ne.s32.totalorder %s201, %s202
    %p214 = scmp.eq.s32.totalorder %s24, 1
    %p215 = por %p213, %p214
    %p217 = scmp.ne.s32.totalorder %s202, %s216
    %p218 = scmp.eq.s32.totalorder %s24, 0
    %p219 = por %p217, %p218
    %s220 = ssub.s32 %s18, %s25
    %p221 = scmp.eq.s32.totalorder %s220, 0
    %s223 = sadd.s32 %s222, 1
    %s224 = scalar_select %p221, %s222, %s223
    %p227 = pneg %p221
    %p228 = scmp.eq.s32.totalorder %s18, 1
    %p229 = por %p227, %p228
    %p230 = scmp.ne.s32.totalorder %s222, %s225
    %p231 = scmp.eq.s32.totalorder %s18, 0
    %p232 = por %p230, %p231
    %p233 = scmp.ne.s32.totalorder %s222, %s225
    %p234 = scmp.eq.s32.totalorder %s23, 1
    %p235 = por %p233, %p234
    %p236 = scmp.ne.s32.totalorder %s225, %s226
    %p237 = scmp.eq.s32.totalorder %s23, 0
    %p238 = por %p236, %p237
    %p239 = scmp.ne.s32.totalorder %s225, %s226
    %p240 = scmp.eq.s32.totalorder %s24, 1
    %p241 = por %p239, %p240
    %p243 = scmp.ne.s32.totalorder %s226, %s242
    %p244 = scmp.eq.s32.totalorder %s24, 0
    %p245 = por %p243, %p244
    %s246 = ssub.s32 %s18, %s25
    %p247 = scmp.eq.s32.totalorder %s246, 0
    %s249 = sadd.s32 %s248, 1
    %s250 = scalar_select %p247, %s248, %s249
    %p253 = pneg %p247
    %p254 = scmp.eq.s32.totalorder %s18, 1
    %p255 = por %p253, %p254
    %p256 = scmp.ne.s32.totalorder %s248, %s251
    %p257 = scmp.eq.s32.totalorder %s18, 0
    %p258 = por %p256, %p257
    %p259 = scmp.ne.s32.totalorder %s248, %s251
    %p260 = scmp.eq.s32.totalorder %s23, 1
    %p261 = por %p259, %p260
    %p262 = scmp.ne.s32.totalorder %s251, %s252
    %p263 = scmp.eq.s32.totalorder %s23, 0
    %p264 = por %p262, %p263
    %p265 = scmp.ne.s32.totalorder %s251, %s252
    %p266 = scmp.eq.s32.totalorder %s24, 1
    %p267 = por %p265, %p266
    %p269 = scmp.ne.s32.totalorder %s252, %s268
    %p270 = scmp.eq.s32.totalorder %s24, 0
    %p271 = por %p269, %p270
    %s272 = ssub.s32 %s18, %s25
    %p273 = scmp.eq.s32.totalorder %s272, 0
    %s275 = sadd.s32 %s274, 1
    %s276 = scalar_select %p273, %s274, %s275
    %p279 = pneg %p273
    %p280 = scmp.eq.s32.totalorder %s18, 1
    %p281 = por %p279, %p280
    %p282 = scmp.ne.s32.totalorder %s274, %s277
    %p283 = scmp.eq.s32.totalorder %s18, 0
    %p284 = por %p282, %p283
    %p285 = scmp.ne.s32.totalorder %s274, %s277
    %p286 = scmp.eq.s32.totalorder %s23, 1
    %p287 = por %p285, %p286
    %p288 = scmp.ne.s32.totalorder %s277, %s278
    %p289 = scmp.eq.s32.totalorder %s23, 0
    %p290 = por %p288, %p289
    %p291 = scmp.ne.s32.totalorder %s277, %s278
    %p292 = scmp.eq.s32.totalorder %s24, 1
    %p293 = por %p291, %p292
    %p295 = scmp.ne.s32.totalorder %s278, %s294
    %p296 = scmp.eq.s32.totalorder %s24, 0
    %p297 = por %p295, %p296
    %p298 = scmp.le.s32.totalorder 1, %s18
    %p299 = scmp.lt.s32.totalorder %s18, 3
    %p300 = pnand %p298, %p299
    %p301 = pneg %p300
    // Predicated region
    $region9: #{dsmil_forward.2} parent=5 // pred_check
      _
    $region10: #{dsmil_forward.2} parent=5 // pred_check_branch
      %303 = sbr.rel (%p300) target = $region12
    $region11: #{dsmil_forward.2} parent=5 // pred_region
      %s304 = ssub.s32 %s18, 1
      // Predicated region
      $region13: #{dsmil_forward.2} parent=11 // pred_check
        %p305 = pneg %p65
      $region14: #{dsmil_forward.2} parent=11 // pred_check_branch
        %307 = sbr.rel (%p305) target = $region16
      $region15: #{dsmil_forward.2} parent=11 // pred_region
        _
      $region16: #{dsmil_forward.2} parent=11 // pred_fallthru
        _
      // Predicated region
      $region17: #{dsmil_forward.2} parent=11 // pred_check
        %p308 = pneg %p86
      $region18: #{dsmil_forward.2} parent=11 // pred_check_branch
        %310 = sbr.rel (%p308) target = $region20
      $region19: #{dsmil_forward.2} parent=11 // pred_region
        _
      $region20: #{dsmil_forward.2} parent=11 // pred_fallthru
        _
      // Predicated region
      $region21: #{dsmil_forward.2} parent=11 // pred_check
        %p311 = pneg %p107
      $region22: #{dsmil_forward.2} parent=11 // pred_check_branch
        %313 = sbr.rel (%p311) target = $region24
      $region23: #{dsmil_forward.2} parent=11 // pred_region
        _
      $region24: #{dsmil_forward.2} parent=11 // pred_fallthru
        _
      // Predicated region
      $region25: #{dsmil_forward.2} parent=11 // pred_check
        %p314 = pneg %p128
      $region26: #{dsmil_forward.2} parent=11 // pred_check_branch
        %316 = sbr.rel (%p314) target = $region28
      $region27: #{dsmil_forward.2} parent=11 // pred_region
        _
      $region28: #{dsmil_forward.2} parent=11 // pred_fallthru
        _
      // Predicated region
      $region29: #{dsmil_forward.2} parent=11 // pred_check
        %p317 = pneg %p149
      $region30: #{dsmil_forward.2} parent=11 // pred_check_branch
        %319 = sbr.rel (%p317) target = $region32
      $region31: #{dsmil_forward.2} parent=11 // pred_region
        _
      $region32: #{dsmil_forward.2} parent=11 // pred_fallthru
        _
      // Predicated region
      $region33: #{dsmil_forward.2} parent=11 // pred_check
        %p320 = pneg %p170
      $region34: #{dsmil_forward.2} parent=11 // pred_check_branch
        %322 = sbr.rel (%p320) target = $region36
      $region35: #{dsmil_forward.2} parent=11 // pred_region
        _
      $region36: #{dsmil_forward.2} parent=11 // pred_fallthru
        _
      // Predicated region
      $region37: #{dsmil_forward.2} parent=11 // pred_check
        %p323 = pneg %p191
      $region38: #{dsmil_forward.2} parent=11 // pred_check_branch
        %325 = sbr.rel (%p323) target = $region40
      $region39: #{dsmil_forward.2} parent=11 // pred_region
        _
      $region40: #{dsmil_forward.2} parent=11 // pred_fallthru
        _
      // Predicated region
      $region41: #{dsmil_forward.2} parent=11 // pred_check
        %p326 = pneg %p212
      $region42: #{dsmil_forward.2} parent=11 // pred_check_branch
        %328 = sbr.rel (%p326) target = $region44
      $region43: #{dsmil_forward.2} parent=11 // pred_region
        _
      $region44: #{dsmil_forward.2} parent=11 // pred_fallthru
        _
    $region12: #{dsmil_forward.2} parent=5 // pred_fallthru
      _
    %p329 = scmp.lt.s32.totalorder %s18, 2
    // Predicated region
    $region45: #{dsmil_forward.2} parent=5 // pred_check
      %p330 = pneg %p329
    $region46: #{dsmil_forward.2} parent=5 // pred_check_branch
      %332 = sbr.rel (%p330) target = $region48
    $region47: #{dsmil_forward.2} parent=5 // pred_region
      // Predicated region
      $region49: #{dsmil_forward.2} parent=47 // pred_check
        %p333 = pneg %p38
      $region50: #{dsmil_forward.2} parent=47 // pred_check_branch
        %335 = sbr.rel (%p333) target = $region52
      $region51: #{dsmil_forward.2} parent=47 // pred_region
        %s336 = smul.u32 16, %s18
        %p337 = scmp.lt.s32.totalorder %s336, 31
        %s338 = scalar_select %p337, %s336, 31
        %s339 = smul.addr %s338, 4
        %s340 = scalar_lea.vmem %s0, %s339
        %s341 = smul.u32 16, %s18
      $region52: #{dsmil_forward.2} parent=47 // pred_fallthru
        _
    $region48: #{dsmil_forward.2} parent=5 // pred_fallthru
      _
    %p342 = scmp.le.s32.totalorder 1, %s18
    %p343 = scmp.lt.s32.totalorder %s18, 3
    %p344 = pnand %p342, %p343
    %p345 = pneg %p344
    // Predicated region
    $region53: #{dsmil_forward.2} parent=5 // pred_check
      _
    $region54: #{dsmil_forward.2} parent=5 // pred_check_branch
      %347 = sbr.rel (%p344) target = $region56
    $region55: #{dsmil_forward.2} parent=5 // pred_region
      %s348 = ssub.s32 %s18, 1
      %s349 = smul.u32 16, %s23
      %p350 = scmp.lt.s32.totalorder %s349, 31
      %s351 = scalar_select %p350, %s349, 31
      %s352 = smul.addr %s351, 4
      %s353 = scalar_lea.vmem %s0, %s352
      %p354 = pneg %p44
      %p355 = pneg %p41
      %p356 = pneg %p65
      %p357 = pneg %p62
      %p358 = pneg %p86
      %p359 = pneg %p83
      %p360 = pneg %p107
      %p361 = pneg %p104
      %p362 = pneg %p128
      %p363 = pneg %p125
      %p364 = pneg %p149
      %p365 = pneg %p146
      %p366 = pneg %p170
      %p367 = pneg %p167
      %p368 = pneg %p191
      %p369 = pneg %p188
      %p370 = pneg %p212
      %p371 = pneg %p209
      %p372 = pneg %p238
      %p373 = pneg %p235
      %p374 = scmp.lt.s32.totalorder %s23, 1
      %s375 = scalar_select %p374, %s23, 1
      %s376 = smul.addr %s375, 2
      %s377 = scalar_lea.vmem %s9, %s376
      %p378 = pneg %p264
      %p379 = pneg %p261
      %s380 = smul.u32 16, %s23
      %p381 = scmp.lt.s32.totalorder %s380, 31
      %s382 = scalar_select %p381, %s380, 31
      %s383 = smul.addr %s382, 4
      %s384 = scalar_lea.vmem %s10, %s383
      %p385 = pneg %p290
      %p386 = pneg %p287
      %s387 = smul.u32 16, %s23
      %p388 = scmp.lt.s32.totalorder %s387, 31
      %s389 = scalar_select %p388, %s387, 31
      %s390 = smul.addr %s389, 4
      %s391 = scalar_lea.vmem %s11, %s390
      %s392 = smul.u32 16, %s23
      %p393 = scmp.lt.s32.totalorder %s392, 31
      %s394 = scalar_select %p393, %s392, 31
      %s395 = smul.addr %s394, 4
      %s396 = scalar_lea.vmem %s0, %s395
      %s397 = smul.u32 16, %s23
      %p398 = scmp.lt.s32.totalorder %s23, 1
      %s399 = scalar_select %p398, %s23, 1
      %s400 = smul.addr %s399, 2
      %s401 = scalar_lea.vmem %s9, %s400
      %s402 = smul.u32 16, %s23
      %p403 = scmp.lt.s32.totalorder %s402, 31
      %s404 = scalar_select %p403, %s402, 31
      %s405 = smul.addr %s404, 4
      %s406 = scalar_lea.vmem %s10, %s405
      %s407 = smul.u32 16, %s23
      %s408 = smul.u32 16, %s23
      %p409 = scmp.lt.s32.totalorder %s408, 31
      %s410 = scalar_select %p409, %s408, 31
      %s411 = smul.addr %s410, 4
      %s412 = scalar_lea.vmem %s11, %s411
      %s413 = smul.u32 16, %s23
      %v415 = vld [vmem:[%s396] sm:$0xf]
      %v416 = vld [vmem:[%s396 + $0x4] sm:$0xf]
      %v417 = vld [vmem:[%s396 + $0x8] sm:$0xf]
      %v418 = vld [vmem:[%s396 + $0xc] sm:$0xf]
      %v419 = vld [vmem:[%s396 + $0x10] sm:$0xf]
      %v420 = vld [vmem:[%s396 + $0x14] sm:$0xf]
      %v421 = vld [vmem:[%s396 + $0x18] sm:$0xf]
      %v422 = vld [vmem:[%s396 + $0x1c] sm:$0xf]
      %v423 = vld [vmem:[%s396 + $0x20] sm:$0xf]
      %v424 = vld [vmem:[%s396 + $0x24] sm:$0xf]
      %v425 = vld [vmem:[%s396 + $0x28] sm:$0xf]
      %v426 = vld [vmem:[%s396 + $0x2c] sm:$0xf]
      %v427 = vld [vmem:[%s396 + $0x30] sm:$0xf]
      %v428 = vld [vmem:[%s396 + $0x34] sm:$0xf]
      %v429 = vld [vmem:[%s396 + $0x38] sm:$0xf]
      %v430 = vld [vmem:[%s396 + $0x3c] sm:$0xf]
      %v431 = vld [vmem:[%s1] sm:$0x1]
      %v432 = vld [vmem:[%s2] sm:$0x3]
      %434 = vset.pattern.permute.xlu0 0
      %435 = vperm.xlu0 %434, %v432
      %v436 = vpop.permute.xlu0 %435
      %v454 = vunpack.c.l.b16 %v415
      %v455 = vunpack.c.l.b16 %v416
      %v456 = vunpack.c.l.b16 %v417
      %v457 = vunpack.c.l.b16 %v418
      %v458 = vunpack.c.l.b16 %v419
      %v459 = vunpack.c.l.b16 %v420
      %v460 = vunpack.c.l.b16 %v421
      %v461 = vunpack.c.l.b16 %v422
      %v462 = vunpack.c.l.b16 %v423
      %v463 = vunpack.c.l.b16 %v424
      %v464 = vunpack.c.l.b16 %v425
      %v465 = vunpack.c.l.b16 %v426
      %v466 = vunpack.c.l.b16 %v427
      %v467 = vunpack.c.l.b16 %v428
      %v468 = vunpack.c.l.b16 %v429
      %v469 = vunpack.c.l.b16 %v430
      %v470 = vpack.c.b16 %v455, %v454
      %v471 = vpack.c.b16 %v457, %v456
      %v472 = vpack.c.b16 %v459, %v458
      %v473 = vpack.c.b16 %v461, %v460
      %v474 = vpack.c.b16 %v463, %v462
      %v475 = vpack.c.b16 %v465, %v464
      %v476 = vpack.c.b16 %v467, %v466
      %v477 = vpack.c.b16 %v469, %v468
      %486 = vmatprep.subr.bf16.mxu0 0
      %487 = vmatpush1.bf16.xpose.msra.mxu0 %v477
      %488 = vmatprep.subr.bf16.mxu0 0
      %489 = vmatpush1.bf16.xpose.msra.mxu0 %v476
      %490 = vmatprep.subr.bf16.mxu0 0
      %491 = vmatpush1.bf16.xpose.msra.mxu0 %v475
      %492 = vmatprep.subr.bf16.mxu0 0
      %493 = vmatpush1.bf16.xpose.msra.mxu0 %v474
      %494 = vmatprep.subr.bf16.mxu0 0
      %495 = vmatpush1.bf16.xpose.msra.mxu0 %v473
      %496 = vmatprep.subr.bf16.mxu0 0
      %497 = vmatpush1.bf16.xpose.msra.mxu0 %v472
      %498 = vmatprep.subr.bf16.mxu0 0
      %499 = vmatpush1.bf16.xpose.msra.mxu0 %v471
      %500 = vmatprep.subr.bf16.mxu0 0
      %501 = vmatpush1.bf16.xpose.msra.mxu0 %v470
      %502 = vmatprep.subr.bf16.mxu0 0
      %503 = vmatpush2.bf16.xpose.msra.mxu0 0
      %504 = vmatprep.subr.bf16.mxu0 0
      %505 = vmatpush2.bf16.xpose.msra.mxu0 0
      %506 = vmatprep.subr.bf16.mxu0 0
      %507 = vmatpush2.bf16.xpose.msra.mxu0 0
      %508 = vmatprep.subr.bf16.mxu0 0
      %509 = vmatpush2.bf16.xpose.msra.mxu0 0
      %510 = vmatprep.subr.bf16.mxu0 0
      %511 = vmatpush2.bf16.xpose.msra.mxu0 0
      %512 = vmatprep.subr.bf16.mxu0 0
      %513 = vmatpush2.bf16.xpose.msra.mxu0 0
      %514 = vmatprep.subr.bf16.mxu0 0
      %515 = vmatpush2.bf16.xpose.msra.mxu0 0
      %516 = vmatprep.subr.bf16.mxu0 0
      %517 = vmatpush2.bf16.xpose.msra.mxu0 0
      %518 = vmatprep.mubr.bf16.mxu0 0
      %519 = vmatmul.mubr.bf16.gmra.mxu0 %v431
      %v520 = vpop.f32.mrf.mxu0
      %v521 = vadd.f32 %v436, %v520
      %v522 = vpop.f32.mrf.mxu0
      %v523 = vpop.f32.mrf.mxu0
      %v524 = vpop.f32.mrf.mxu0
      %525 = vdwg.mxu0
      %526 = vst [vmem:[%s401] sm:$0x3] %v521
      %v527 = vld [vmem:[%s3] sm:$0xf]
      %v528 = vld [vmem:[%s3 + $0x4] sm:$0xf]
      %v529 = vld [vmem:[%s3 + $0x8] sm:$0xf]
      %v530 = vld [vmem:[%s3 + $0xc] sm:$0xf]
      %v531 = vld [vmem:[%s3 + $0x10] sm:$0xf]
      %v532 = vld [vmem:[%s3 + $0x14] sm:$0xf]
      %v533 = vld [vmem:[%s3 + $0x18] sm:$0xf]
      %v534 = vld [vmem:[%s3 + $0x1c] sm:$0xf]
      %v535 = vld [vmem:[%s3 + $0x20] sm:$0xf]
      %v536 = vld [vmem:[%s3 + $0x24] sm:$0xf]
      %v537 = vld [vmem:[%s3 + $0x28] sm:$0xf]
      %v538 = vld [vmem:[%s3 + $0x2c] sm:$0xf]
      %v539 = vld [vmem:[%s3 + $0x30] sm:$0xf]
      %v540 = vld [vmem:[%s3 + $0x34] sm:$0xf]
      %v541 = vld [vmem:[%s3 + $0x38] sm:$0xf]
      %v542 = vld [vmem:[%s3 + $0x3c] sm:$0xf]
      %v543 = vld [vmem:[%s4] sm:$0x1]
      %v545 = vlaneseq
      %v546 = vshrl.u32 %v545, 7
      %v547 = vsub.s32 0, %v546
      %v548 = vrot.slane %v543, %v547
      %v566 = vunpack.c.l.b16 %v527
      %v567 = vunpack.c.l.b16 %v528
      %v568 = vunpack.c.l.b16 %v529
      %v569 = vunpack.c.l.b16 %v530
      %v570 = vunpack.c.l.b16 %v531
      %v571 = vunpack.c.l.b16 %v532
      %v572 = vunpack.c.l.b16 %v533
      %v573 = vunpack.c.l.b16 %v534
      %v574 = vunpack.c.l.b16 %v535
      %v575 = vunpack.c.l.b16 %v536
      %v576 = vunpack.c.l.b16 %v537
      %v577 = vunpack.c.l.b16 %v538
      %v578 = vunpack.c.l.b16 %v539
      %v579 = vunpack.c.l.b16 %v540
      %v580 = vunpack.c.l.b16 %v541
      %v581 = vunpack.c.l.b16 %v542
      %v582 = vpack.c.b16 %v567, %v566
      %v583 = vpack.c.b16 %v569, %v568
      %v584 = vpack.c.b16 %v571, %v570
      %v585 = vpack.c.b16 %v573, %v572
      %v586 = vpack.c.b16 %v575, %v574
      %v587 = vpack.c.b16 %v577, %v576
      %v588 = vpack.c.b16 %v579, %v578
      %v589 = vpack.c.b16 %v581, %v580
      %598 = vmatprep.subr.bf16.mxu0 0
      %599 = vmatpush1.bf16.msra.mxu0 %v589
      %600 = vmatprep.subr.bf16.mxu0 0
      %601 = vmatpush1.bf16.msra.mxu0 %v588
      %602 = vmatprep.subr.bf16.mxu0 0
      %603 = vmatpush1.bf16.msra.mxu0 %v587
      %604 = vmatprep.subr.bf16.mxu0 0
      %605 = vmatpush1.bf16.msra.mxu0 %v586
      %606 = vmatprep.subr.bf16.mxu0 0
      %607 = vmatpush1.bf16.msra.mxu0 %v585
      %608 = vmatprep.subr.bf16.mxu0 0
      %609 = vmatpush1.bf16.msra.mxu0 %v584
      %610 = vmatprep.subr.bf16.mxu0 0
      %611 = vmatpush1.bf16.msra.mxu0 %v583
      %612 = vmatprep.subr.bf16.mxu0 0
      %613 = vmatpush1.bf16.msra.mxu0 %v582
      %614 = vmatprep.subr.bf16.mxu0 0
      %615 = vmatpush2.bf16.msra.mxu0 0
      %616 = vmatprep.subr.bf16.mxu0 0
      %617 = vmatpush2.bf16.msra.mxu0 0
      %618 = vmatprep.subr.bf16.mxu0 0
      %619 = vmatpush2.bf16.msra.mxu0 0
      %620 = vmatprep.subr.bf16.mxu0 0
      %621 = vmatpush2.bf16.msra.mxu0 0
      %622 = vmatprep.subr.bf16.mxu0 0
      %623 = vmatpush2.bf16.msra.mxu0 0
      %624 = vmatprep.subr.bf16.mxu0 0
      %625 = vmatpush2.bf16.msra.mxu0 0
      %626 = vmatprep.subr.bf16.mxu0 0
      %627 = vmatpush2.bf16.msra.mxu0 0
      %628 = vmatprep.subr.bf16.mxu0 0
      %629 = vmatpush2.bf16.msra.mxu0 0
      %630 = vmatprep.mubr.bf16.mxu0 0
      %631 = vmatmul.mubr.bf16.gmra.mxu0 %v470
      %v632 = vpop.f32.mrf.mxu0
      %v633 = vadd.f32 %v548, %v632
      %v634 = vpop.f32.mrf.mxu0
      %v635 = vpop.f32.mrf.mxu0
      %v636 = vadd.f32 %v548, %v635
      %v637 = vpop.f32.mrf.mxu0
      %638 = vmatprep.mubr.bf16.mxu0 0
      %639 = vmatmul.mubr.bf16.gmra.mxu0 %v471
      %v640 = vpop.f32.mrf.mxu0
      %v641 = vadd.f32 %v548, %v640
      %v642 = vpop.f32.mrf.mxu0
      %v643 = vpop.f32.mrf.mxu0
      %v644 = vadd.f32 %v548, %v643
      %v645 = vpop.f32.mrf.mxu0
      %646 = vmatprep.mubr.bf16.mxu0 0
      %647 = vmatmul.mubr.bf16.gmra.mxu0 %v472
      %v648 = vpop.f32.mrf.mxu0
      %v649 = vadd.f32 %v548, %v648
      %v650 = vpop.f32.mrf.mxu0
      %v651 = vpop.f32.mrf.mxu0
      %v652 = vadd.f32 %v548, %v651
      %v653 = vpop.f32.mrf.mxu0
      %654 = vmatprep.mubr.bf16.mxu0 0
      %655 = vmatmul.mubr.bf16.gmra.mxu0 %v473
      %v656 = vpop.f32.mrf.mxu0
      %v657 = vadd.f32 %v548, %v656
      %v658 = vpop.f32.mrf.mxu0
      %v659 = vpop.f32.mrf.mxu0
      %v660 = vadd.f32 %v548, %v659
      %v661 = vpop.f32.mrf.mxu0
      %662 = vmatprep.mubr.bf16.mxu0 0
      %663 = vmatmul.mubr.bf16.gmra.mxu0 %v474
      %v664 = vpop.f32.mrf.mxu0
      %v665 = vadd.f32 %v548, %v664
      %v666 = vpop.f32.mrf.mxu0
      %v667 = vpop.f32.mrf.mxu0
      %v668 = vadd.f32 %v548, %v667
      %v669 = vpop.f32.mrf.mxu0
      %670 = vmatprep.mubr.bf16.mxu0 0
      %671 = vmatmul.mubr.bf16.gmra.mxu0 %v475
      %v672 = vpop.f32.mrf.mxu0
      %v673 = vadd.f32 %v548, %v672
      %v674 = vpop.f32.mrf.mxu0
      %v675 = vpop.f32.mrf.mxu0
      %v676 = vadd.f32 %v548, %v675
      %v677 = vpop.f32.mrf.mxu0
      %678 = vmatprep.mubr.bf16.mxu0 0
      %679 = vmatmul.mubr.bf16.gmra.mxu0 %v476
      %v680 = vpop.f32.mrf.mxu0
      %v681 = vadd.f32 %v548, %v680
      %v682 = vpop.f32.mrf.mxu0
      %v683 = vpop.f32.mrf.mxu0
      %v684 = vadd.f32 %v548, %v683
      %v685 = vpop.f32.mrf.mxu0
      %686 = vmatprep.mubr.bf16.mxu0 0
      %687 = vmatmul.mubr.bf16.gmra.mxu0 %v477
      %v688 = vpop.f32.mrf.mxu0
      %v689 = vadd.f32 %v548, %v688
      %v690 = vpop.f32.mrf.mxu0
      %v691 = vpop.f32.mrf.mxu0
      %v692 = vadd.f32 %v548, %v691
      %v693 = vpop.f32.mrf.mxu0
      %694 = vdwg.mxu0
      %v695 = vmax.f32 %v633, 0.0
      %v696 = vmax.f32 %v636, 0.0
      %v697 = vmax.f32 %v641, 0.0
      %v698 = vmax.f32 %v644, 0.0
      %v699 = vmax.f32 %v649, 0.0
      %v700 = vmax.f32 %v652, 0.0
      %v701 = vmax.f32 %v657, 0.0
      %v702 = vmax.f32 %v660, 0.0
      %v703 = vmax.f32 %v665, 0.0
      %v704 = vmax.f32 %v668, 0.0
      %v705 = vmax.f32 %v673, 0.0
      %v706 = vmax.f32 %v676, 0.0
      %v707 = vmax.f32 %v681, 0.0
      %v708 = vmax.f32 %v684, 0.0
      %v709 = vmax.f32 %v689, 0.0
      %v710 = vmax.f32 %v692, 0.0
      %v711 = vpack.c.bf16 %v696, %v695
      %v712 = vpack.c.bf16 %v698, %v697
      %v713 = vpack.c.bf16 %v700, %v699
      %v714 = vpack.c.bf16 %v702, %v701
      %v715 = vpack.c.bf16 %v704, %v703
      %v716 = vpack.c.bf16 %v706, %v705
      %v717 = vpack.c.bf16 %v708, %v707
      %v718 = vpack.c.bf16 %v710, %v709
      %v719 = vld [vmem:[%s5] sm:$0xf]
      %v720 = vld [vmem:[%s5 + $0x4] sm:$0xf]
      %v721 = vld [vmem:[%s5 + $0x8] sm:$0xf]
      %v722 = vld [vmem:[%s5 + $0xc] sm:$0xf]
      %v723 = vld [vmem:[%s5 + $0x10] sm:$0xf]
      %v724 = vld [vmem:[%s5 + $0x14] sm:$0xf]
      %v725 = vld [vmem:[%s5 + $0x18] sm:$0xf]
      %v726 = vld [vmem:[%s5 + $0x1c] sm:$0xf]
      %v727 = vld [vmem:[%s5 + $0x20] sm:$0xf]
      %v728 = vld [vmem:[%s5 + $0x24] sm:$0xf]
      %v729 = vld [vmem:[%s5 + $0x28] sm:$0xf]
      %v730 = vld [vmem:[%s5 + $0x2c] sm:$0xf]
      %v731 = vld [vmem:[%s5 + $0x30] sm:$0xf]
      %v732 = vld [vmem:[%s5 + $0x34] sm:$0xf]
      %v733 = vld [vmem:[%s5 + $0x38] sm:$0xf]
      %v734 = vld [vmem:[%s5 + $0x3c] sm:$0xf]
      %v735 = vld [vmem:[%s6] sm:$0x1]
      %v737 = vlaneseq
      %v738 = vshrl.u32 %v737, 7
      %v739 = vsub.s32 0, %v738
      %v740 = vrot.slane %v735, %v739
      %v758 = vunpack.c.l.b16 %v719
      %v759 = vunpack.c.l.b16 %v720
      %v760 = vunpack.c.l.b16 %v721
      %v761 = vunpack.c.l.b16 %v722
      %v762 = vunpack.c.l.b16 %v723
      %v763 = vunpack.c.l.b16 %v724
      %v764 = vunpack.c.l.b16 %v725
      %v765 = vunpack.c.l.b16 %v726
      %v766 = vunpack.c.l.b16 %v727
      %v767 = vunpack.c.l.b16 %v728
      %v768 = vunpack.c.l.b16 %v729
      %v769 = vunpack.c.l.b16 %v730
      %v770 = vunpack.c.l.b16 %v731
      %v771 = vunpack.c.l.b16 %v732
      %v772 = vunpack.c.l.b16 %v733
      %v773 = vunpack.c.l.b16 %v734
      %v774 = vpack.c.b16 %v759, %v758
      %v775 = vpack.c.b16 %v761, %v760
      %v776 = vpack.c.b16 %v763, %v762
      %v777 = vpack.c.b16 %v765, %v764
      %v778 = vpack.c.b16 %v767, %v766
      %v779 = vpack.c.b16 %v769, %v768
      %v780 = vpack.c.b16 %v771, %v770
      %v781 = vpack.c.b16 %v773, %v772
      %790 = vmatprep.subr.bf16.mxu0 0
      %791 = vmatpush1.bf16.msra.mxu0 %v781
      %792 = vmatprep.subr.bf16.mxu0 0
      %793 = vmatpush1.bf16.msra.mxu0 %v780
      %794 = vmatprep.subr.bf16.mxu0 0
      %795 = vmatpush1.bf16.msra.mxu0 %v779
      %796 = vmatprep.subr.bf16.mxu0 0
      %797 = vmatpush1.bf16.msra.mxu0 %v778
      %798 = vmatprep.subr.bf16.mxu0 0
      %799 = vmatpush1.bf16.msra.mxu0 %v777
      %800 = vmatprep.subr.bf16.mxu0 0
      %801 = vmatpush1.bf16.msra.mxu0 %v776
      %802 = vmatprep.subr.bf16.mxu0 0
      %803 = vmatpush1.bf16.msra.mxu0 %v775
      %804 = vmatprep.subr.bf16.mxu0 0
      %805 = vmatpush1.bf16.msra.mxu0 %v774
      %806 = vmatprep.subr.bf16.mxu0 0
      %807 = vmatpush2.bf16.msra.mxu0 0
      %808 = vmatprep.subr.bf16.mxu0 0
      %809 = vmatpush2.bf16.msra.mxu0 0
      %810 = vmatprep.subr.bf16.mxu0 0
      %811 = vmatpush2.bf16.msra.mxu0 0
      %812 = vmatprep.subr.bf16.mxu0 0
      %813 = vmatpush2.bf16.msra.mxu0 0
      %814 = vmatprep.subr.bf16.mxu0 0
      %815 = vmatpush2.bf16.msra.mxu0 0
      %816 = vmatprep.subr.bf16.mxu0 0
      %817 = vmatpush2.bf16.msra.mxu0 0
      %818 = vmatprep.subr.bf16.mxu0 0
      %819 = vmatpush2.bf16.msra.mxu0 0
      %820 = vmatprep.subr.bf16.mxu0 0
      %821 = vmatpush2.bf16.msra.mxu0 0
      %822 = vmatprep.mubr.bf16.mxu0 0
      %823 = vmatmul.mubr.bf16.gmra.mxu0 %v711
      %v824 = vpop.f32.mrf.mxu0
      %v825 = vadd.f32 %v740, %v824
      %v826 = vpop.f32.mrf.mxu0
      %v827 = vpop.f32.mrf.mxu0
      %v828 = vadd.f32 %v740, %v827
      %v829 = vpop.f32.mrf.mxu0
      %830 = vmatprep.mubr.bf16.mxu0 0
      %831 = vmatmul.mubr.bf16.gmra.mxu0 %v712
      %v832 = vpop.f32.mrf.mxu0
      %v833 = vadd.f32 %v740, %v832
      %v834 = vpop.f32.mrf.mxu0
      %v835 = vpop.f32.mrf.mxu0
      %v836 = vadd.f32 %v740, %v835
      %v837 = vpop.f32.mrf.mxu0
      %838 = vmatprep.mubr.bf16.mxu0 0
      %839 = vmatmul.mubr.bf16.gmra.mxu0 %v713
      %v840 = vpop.f32.mrf.mxu0
      %v841 = vadd.f32 %v740, %v840
      %v842 = vpop.f32.mrf.mxu0
      %v843 = vpop.f32.mrf.mxu0
      %v844 = vadd.f32 %v740, %v843
      %v845 = vpop.f32.mrf.mxu0
      %846 = vmatprep.mubr.bf16.mxu0 0
      %847 = vmatmul.mubr.bf16.gmra.mxu0 %v714
      %v848 = vpop.f32.mrf.mxu0
      %v849 = vadd.f32 %v740, %v848
      %v850 = vpop.f32.mrf.mxu0
      %v851 = vpop.f32.mrf.mxu0
      %v852 = vadd.f32 %v740, %v851
      %v853 = vpop.f32.mrf.mxu0
      %854 = vmatprep.mubr.bf16.mxu0 0
      %855 = vmatmul.mubr.bf16.gmra.mxu0 %v715
      %v856 = vpop.f32.mrf.mxu0
      %v857 = vadd.f32 %v740, %v856
      %v858 = vpop.f32.mrf.mxu0
      %v859 = vpop.f32.mrf.mxu0
      %v860 = vadd.f32 %v740, %v859
      %v861 = vpop.f32.mrf.mxu0
      %862 = vmatprep.mubr.bf16.mxu0 0
      %863 = vmatmul.mubr.bf16.gmra.mxu0 %v716
      %v864 = vpop.f32.mrf.mxu0
      %v865 = vadd.f32 %v740, %v864
      %v866 = vpop.f32.mrf.mxu0
      %v867 = vpop.f32.mrf.mxu0
      %v868 = vadd.f32 %v740, %v867
      %v869 = vpop.f32.mrf.mxu0
      %870 = vmatprep.mubr.bf16.mxu0 0
      %871 = vmatmul.mubr.bf16.gmra.mxu0 %v717
      %v872 = vpop.f32.mrf.mxu0
      %v873 = vadd.f32 %v740, %v872
      %v874 = vpop.f32.mrf.mxu0
      %v875 = vpop.f32.mrf.mxu0
      %v876 = vadd.f32 %v740, %v875
      %v877 = vpop.f32.mrf.mxu0
      %878 = vmatprep.mubr.bf16.mxu0 0
      %879 = vmatmul.mubr.bf16.gmra.mxu0 %v718
      %v880 = vpop.f32.mrf.mxu0
      %v881 = vadd.f32 %v740, %v880
      %v882 = vpop.f32.mrf.mxu0
      %v883 = vpop.f32.mrf.mxu0
      %v884 = vadd.f32 %v740, %v883
      %v885 = vpop.f32.mrf.mxu0
      %886 = vdwg.mxu0
      %v887 = vtanh.pop %v825
      %v888 = vtanh.pop %v828
      %v889 = vtanh.pop %v833
      %v890 = vtanh.pop %v836
      %v891 = vtanh.pop %v841
      %v892 = vtanh.pop %v844
      %v893 = vtanh.pop %v849
      %v894 = vtanh.pop %v852
      %v895 = vtanh.pop %v857
      %v896 = vtanh.pop %v860
      %v897 = vtanh.pop %v865
      %v898 = vtanh.pop %v868
      %v899 = vtanh.pop %v873
      %v900 = vtanh.pop %v876
      %v901 = vtanh.pop %v881
      %v902 = vtanh.pop %v884
      %v903 = vpack.c.bf16 %v888, %v887
      %v904 = vpack.c.bf16 %v890, %v889
      %v905 = vpack.c.bf16 %v892, %v891
      %v906 = vpack.c.bf16 %v894, %v893
      %v907 = vpack.c.bf16 %v896, %v895
      %v908 = vpack.c.bf16 %v898, %v897
      %v909 = vpack.c.bf16 %v900, %v899
      %v910 = vpack.c.bf16 %v902, %v901
      %v919 = vunpack.c.l.b16 %v903
      %v920 = vunpack.c.h.b16 %v903
      %v921 = vunpack.c.l.b16 %v904
      %v922 = vunpack.c.h.b16 %v904
      %v923 = vunpack.c.l.b16 %v905
      %v924 = vunpack.c.h.b16 %v905
      %v925 = vunpack.c.l.b16 %v906
      %v926 = vunpack.c.h.b16 %v906
      %v927 = vunpack.c.l.b16 %v907
      %v928 = vunpack.c.h.b16 %v907
      %v929 = vunpack.c.l.b16 %v908
      %v930 = vunpack.c.h.b16 %v908
      %v931 = vunpack.c.l.b16 %v909
      %v932 = vunpack.c.h.b16 %v909
      %v933 = vunpack.c.l.b16 %v910
      %v934 = vunpack.c.h.b16 %v910
      %v935 = vpack.c.b16 %v919, %v919
      %v936 = vpack.c.b16 %v920, %v920
      %v937 = vpack.c.b16 %v921, %v921
      %v938 = vpack.c.b16 %v922, %v922
      %v939 = vpack.c.b16 %v923, %v923
      %v940 = vpack.c.b16 %v924, %v924
      %v941 = vpack.c.b16 %v925, %v925
      %v942 = vpack.c.b16 %v926, %v926
      %v943 = vpack.c.b16 %v927, %v927
      %v944 = vpack.c.b16 %v928, %v928
      %v945 = vpack.c.b16 %v929, %v929
      %v946 = vpack.c.b16 %v930, %v930
      %v947 = vpack.c.b16 %v931, %v931
      %v948 = vpack.c.b16 %v932, %v932
      %v949 = vpack.c.b16 %v933, %v933
      %v950 = vpack.c.b16 %v934, %v934
      %967 = vst [vmem:[%s406] sm:$0xf] %v935
      %968 = vst [vmem:[%s406 + $0x4] sm:$0xf] %v936
      %969 = vst [vmem:[%s406 + $0x8] sm:$0xf] %v937
      %970 = vst [vmem:[%s406 + $0xc] sm:$0xf] %v938
      %971 = vst [vmem:[%s406 + $0x10] sm:$0xf] %v939
      %972 = vst [vmem:[%s406 + $0x14] sm:$0xf] %v940
      %973 = vst [vmem:[%s406 + $0x18] sm:$0xf] %v941
      %974 = vst [vmem:[%s406 + $0x1c] sm:$0xf] %v942
      %975 = vst [vmem:[%s406 + $0x20] sm:$0xf] %v943
      %976 = vst [vmem:[%s406 + $0x24] sm:$0xf] %v944
      %977 = vst [vmem:[%s406 + $0x28] sm:$0xf] %v945
      %978 = vst [vmem:[%s406 + $0x2c] sm:$0xf] %v946
      %979 = vst [vmem:[%s406 + $0x30] sm:$0xf] %v947
      %980 = vst [vmem:[%s406 + $0x34] sm:$0xf] %v948
      %981 = vst [vmem:[%s406 + $0x38] sm:$0xf] %v949
      %982 = vst [vmem:[%s406 + $0x3c] sm:$0xf] %v950
      %v983 = vld [vmem:[%s7] sm:$0xf]
      %v984 = vld [vmem:[%s7 + $0x4] sm:$0xf]
      %v985 = vld [vmem:[%s7 + $0x8] sm:$0xf]
      %v986 = vld [vmem:[%s7 + $0xc] sm:$0xf]
      %v987 = vld [vmem:[%s7 + $0x10] sm:$0xf]
      %v988 = vld [vmem:[%s7 + $0x14] sm:$0xf]
      %v989 = vld [vmem:[%s7 + $0x18] sm:$0xf]
      %v990 = vld [vmem:[%s7 + $0x1c] sm:$0xf]
      %v991 = vld [vmem:[%s7 + $0x20] sm:$0xf]
      %v992 = vld [vmem:[%s7 + $0x24] sm:$0xf]
      %v993 = vld [vmem:[%s7 + $0x28] sm:$0xf]
      %v994 = vld [vmem:[%s7 + $0x2c] sm:$0xf]
      %v995 = vld [vmem:[%s7 + $0x30] sm:$0xf]
      %v996 = vld [vmem:[%s7 + $0x34] sm:$0xf]
      %v997 = vld [vmem:[%s7 + $0x38] sm:$0xf]
      %v998 = vld [vmem:[%s7 + $0x3c] sm:$0xf]
      %v999 = vld [vmem:[%s8] sm:$0x1]
      %v1001 = vlaneseq
      %v1002 = vshrl.u32 %v1001, 7
      %v1003 = vsub.s32 0, %v1002
      %v1004 = vrot.slane %v999, %v1003
      %v1022 = vunpack.c.l.b16 %v983
      %v1023 = vunpack.c.l.b16 %v984
      %v1024 = vunpack.c.l.b16 %v985
      %v1025 = vunpack.c.l.b16 %v986
      %v1026 = vunpack.c.l.b16 %v987
      %v1027 = vunpack.c.l.b16 %v988
      %v1028 = vunpack.c.l.b16 %v989
      %v1029 = vunpack.c.l.b16 %v990
      %v1030 = vunpack.c.l.b16 %v991
      %v1031 = vunpack.c.l.b16 %v992
      %v1032 = vunpack.c.l.b16 %v993
      %v1033 = vunpack.c.l.b16 %v994
      %v1034 = vunpack.c.l.b16 %v995
      %v1035 = vunpack.c.l.b16 %v996
      %v1036 = vunpack.c.l.b16 %v997
      %v1037 = vunpack.c.l.b16 %v998
      %v1038 = vpack.c.b16 %v1023, %v1022
      %v1039 = vpack.c.b16 %v1025, %v1024
      %v1040 = vpack.c.b16 %v1027, %v1026
      %v1041 = vpack.c.b16 %v1029, %v1028
      %v1042 = vpack.c.b16 %v1031, %v1030
      %v1043 = vpack.c.b16 %v1033, %v1032
      %v1044 = vpack.c.b16 %v1035, %v1034
      %v1045 = vpack.c.b16 %v1037, %v1036
      %1054 = vmatprep.subr.bf16.mxu0 0
      %1055 = vmatpush1.bf16.msra.mxu0 %v1045
      %1056 = vmatprep.subr.bf16.mxu0 0
      %1057 = vmatpush1.bf16.msra.mxu0 %v1044
      %1058 = vmatprep.subr.bf16.mxu0 0
      %1059 = vmatpush1.bf16.msra.mxu0 %v1043
      %1060 = vmatprep.subr.bf16.mxu0 0
      %1061 = vmatpush1.bf16.msra.mxu0 %v1042
      %1062 = vmatprep.subr.bf16.mxu0 0
      %1063 = vmatpush1.bf16.msra.mxu0 %v1041
      %1064 = vmatprep.subr.bf16.mxu0 0
      %1065 = vmatpush1.bf16.msra.mxu0 %v1040
      %1066 = vmatprep.subr.bf16.mxu0 0
      %1067 = vmatpush1.bf16.msra.mxu0 %v1039
      %1068 = vmatprep.subr.bf16.mxu0 0
      %1069 = vmatpush1.bf16.msra.mxu0 %v1038
      %1070 = vmatprep.subr.bf16.mxu0 0
      %1071 = vmatpush2.bf16.msra.mxu0 0
      %1072 = vmatprep.subr.bf16.mxu0 0
      %1073 = vmatpush2.bf16.msra.mxu0 0
      %1074 = vmatprep.subr.bf16.mxu0 0
      %1075 = vmatpush2.bf16.msra.mxu0 0
      %1076 = vmatprep.subr.bf16.mxu0 0
      %1077 = vmatpush2.bf16.msra.mxu0 0
      %1078 = vmatprep.subr.bf16.mxu0 0
      %1079 = vmatpush2.bf16.msra.mxu0 0
      %1080 = vmatprep.subr.bf16.mxu0 0
      %1081 = vmatpush2.bf16.msra.mxu0 0
      %1082 = vmatprep.subr.bf16.mxu0 0
      %1083 = vmatpush2.bf16.msra.mxu0 0
      %1084 = vmatprep.subr.bf16.mxu0 0
      %1085 = vmatpush2.bf16.msra.mxu0 0
      %1086 = vmatprep.mubr.bf16.mxu0 0
      %1087 = vmatmul.mubr.bf16.gmra.mxu0 %v470
      %v1088 = vpop.f32.mrf.mxu0
      %v1089 = vadd.f32 %v1004, %v1088
      %v1090 = vpop.f32.mrf.mxu0
      %v1091 = vpop.f32.mrf.mxu0
      %v1092 = vadd.f32 %v1004, %v1091
      %v1093 = vpop.f32.mrf.mxu0
      %1094 = vmatprep.mubr.bf16.mxu0 0
      %1095 = vmatmul.mubr.bf16.gmra.mxu0 %v471
      %v1096 = vpop.f32.mrf.mxu0
      %v1097 = vadd.f32 %v1004, %v1096
      %v1098 = vpop.f32.mrf.mxu0
      %v1099 = vpop.f32.mrf.mxu0
      %v1100 = vadd.f32 %v1004, %v1099
      %v1101 = vpop.f32.mrf.mxu0
      %1102 = vmatprep.mubr.bf16.mxu0 0
      %1103 = vmatmul.mubr.bf16.gmra.mxu0 %v472
      %v1104 = vpop.f32.mrf.mxu0
      %v1105 = vadd.f32 %v1004, %v1104
      %v1106 = vpop.f32.mrf.mxu0
      %v1107 = vpop.f32.mrf.mxu0
      %v1108 = vadd.f32 %v1004, %v1107
      %v1109 = vpop.f32.mrf.mxu0
      %1110 = vmatprep.mubr.bf16.mxu0 0
      %1111 = vmatmul.mubr.bf16.gmra.mxu0 %v473
      %v1112 = vpop.f32.mrf.mxu0
      %v1113 = vadd.f32 %v1004, %v1112
      %v1114 = vpop.f32.mrf.mxu0
      %v1115 = vpop.f32.mrf.mxu0
      %v1116 = vadd.f32 %v1004, %v1115
      %v1117 = vpop.f32.mrf.mxu0
      %1118 = vmatprep.mubr.bf16.mxu0 0
      %1119 = vmatmul.mubr.bf16.gmra.mxu0 %v474
      %v1120 = vpop.f32.mrf.mxu0
      %v1121 = vadd.f32 %v1004, %v1120
      %v1122 = vpop.f32.mrf.mxu0
      %v1123 = vpop.f32.mrf.mxu0
      %v1124 = vadd.f32 %v1004, %v1123
      %v1125 = vpop.f32.mrf.mxu0
      %1126 = vmatprep.mubr.bf16.mxu0 0
      %1127 = vmatmul.mubr.bf16.gmra.mxu0 %v475
      %v1128 = vpop.f32.mrf.mxu0
      %v1129 = vadd.f32 %v1004, %v1128
      %v1130 = vpop.f32.mrf.mxu0
      %v1131 = vpop.f32.mrf.mxu0
      %v1132 = vadd.f32 %v1004, %v1131
      %v1133 = vpop.f32.mrf.mxu0
      %1134 = vmatprep.mubr.bf16.mxu0 0
      %1135 = vmatmul.mubr.bf16.gmra.mxu0 %v476
      %v1136 = vpop.f32.mrf.mxu0
      %v1137 = vadd.f32 %v1004, %v1136
      %v1138 = vpop.f32.mrf.mxu0
      %v1139 = vpop.f32.mrf.mxu0
      %v1140 = vadd.f32 %v1004, %v1139
      %v1141 = vpop.f32.mrf.mxu0
      %1142 = vmatprep.mubr.bf16.mxu0 0
      %1143 = vmatmul.mubr.bf16.gmra.mxu0 %v477
      %v1144 = vpop.f32.mrf.mxu0
      %v1145 = vadd.f32 %v1004, %v1144
      %v1146 = vpop.f32.mrf.mxu0
      %v1147 = vpop.f32.mrf.mxu0
      %v1148 = vadd.f32 %v1004, %v1147
      %v1149 = vpop.f32.mrf.mxu0
      %1150 = vdwg.mxu0
      %v1151 = vmax.f32 %v1089, 0.0
      %v1152 = vmax.f32 %v1092, 0.0
      %v1153 = vmax.f32 %v1097, 0.0
      %v1154 = vmax.f32 %v1100, 0.0
      %v1155 = vmax.f32 %v1105, 0.0
      %v1156 = vmax.f32 %v1108, 0.0
      %v1157 = vmax.f32 %v1113, 0.0
      %v1158 = vmax.f32 %v1116, 0.0
      %v1159 = vmax.f32 %v1121, 0.0
      %v1160 = vmax.f32 %v1124, 0.0
      %v1161 = vmax.f32 %v1129, 0.0
      %v1162 = vmax.f32 %v1132, 0.0
      %v1163 = vmax.f32 %v1137, 0.0
      %v1164 = vmax.f32 %v1140, 0.0
      %v1165 = vmax.f32 %v1145, 0.0
      %v1166 = vmax.f32 %v1148, 0.0
      %v1167 = vpack.c.bf16 %v1152, %v1151
      %v1168 = vpack.c.bf16 %v1154, %v1153
      %v1169 = vpack.c.bf16 %v1156, %v1155
      %v1170 = vpack.c.bf16 %v1158, %v1157
      %v1171 = vpack.c.bf16 %v1160, %v1159
      %v1172 = vpack.c.bf16 %v1162, %v1161
      %v1173 = vpack.c.bf16 %v1164, %v1163
      %v1174 = vpack.c.bf16 %v1166, %v1165
      %v1183 = vunpack.c.l.b16 %v1167
      %v1184 = vunpack.c.h.b16 %v1167
      %v1185 = vunpack.c.l.b16 %v1168
      %v1186 = vunpack.c.h.b16 %v1168
      %v1187 = vunpack.c.l.b16 %v1169
      %v1188 = vunpack.c.h.b16 %v1169
      %v1189 = vunpack.c.l.b16 %v1170
      %v1190 = vunpack.c.h.b16 %v1170
      %v1191 = vunpack.c.l.b16 %v1171
      %v1192 = vunpack.c.h.b16 %v1171
      %v1193 = vunpack.c.l.b16 %v1172
      %v1194 = vunpack.c.h.b16 %v1172
      %v1195 = vunpack.c.l.b16 %v1173
      %v1196 = vunpack.c.h.b16 %v1173
      %v1197 = vunpack.c.l.b16 %v1174
      %v1198 = vunpack.c.h.b16 %v1174
      %v1199 = vpack.c.b16 %v1183, %v1183
      %v1200 = vpack.c.b16 %v1184, %v1184
      %v1201 = vpack.c.b16 %v1185, %v1185
      %v1202 = vpack.c.b16 %v1186, %v1186
      %v1203 = vpack.c.b16 %v1187, %v1187
      %v1204 = vpack.c.b16 %v1188, %v1188
      %v1205 = vpack.c.b16 %v1189, %v1189
      %v1206 = vpack.c.b16 %v1190, %v1190
      %v1207 = vpack.c.b16 %v1191, %v1191
      %v1208 = vpack.c.b16 %v1192, %v1192
      %v1209 = vpack.c.b16 %v1193, %v1193
      %v1210 = vpack.c.b16 %v1194, %v1194
      %v1211 = vpack.c.b16 %v1195, %v1195
      %v1212 = vpack.c.b16 %v1196, %v1196
      %v1213 = vpack.c.b16 %v1197, %v1197
      %v1214 = vpack.c.b16 %v1198, %v1198
      %1231 = vst [vmem:[%s412] sm:$0xf] %v1199
      %1232 = vst [vmem:[%s412 + $0x4] sm:$0xf] %v1200
      %1233 = vst [vmem:[%s412 + $0x8] sm:$0xf] %v1201
      %1234 = vst [vmem:[%s412 + $0xc] sm:$0xf] %v1202
      %1235 = vst [vmem:[%s412 + $0x10] sm:$0xf] %v1203
      %1236 = vst [vmem:[%s412 + $0x14] sm:$0xf] %v1204
      %1237 = vst [vmem:[%s412 + $0x18] sm:$0xf] %v1205
      %1238 = vst [vmem:[%s412 + $0x1c] sm:$0xf] %v1206
      %1239 = vst [vmem:[%s412 + $0x20] sm:$0xf] %v1207
      %1240 = vst [vmem:[%s412 + $0x24] sm:$0xf] %v1208
      %1241 = vst [vmem:[%s412 + $0x28] sm:$0xf] %v1209
      %1242 = vst [vmem:[%s412 + $0x2c] sm:$0xf] %v1210
      %1243 = vst [vmem:[%s412 + $0x30] sm:$0xf] %v1211
      %1244 = vst [vmem:[%s412 + $0x34] sm:$0xf] %v1212
      %1245 = vst [vmem:[%s412 + $0x38] sm:$0xf] %v1213
      %1246 = vst [vmem:[%s412 + $0x3c] sm:$0xf] %v1214
      %p1247 = scmp.lt.s32.totalorder %s23, 1
      %s1248 = scalar_select %p1247, %s23, 1
      %s1249 = smul.addr %s1248, 2
      %s1250 = scalar_lea.vmem %s9, %s1249
      %s1251 = smul.u32 16, %s23
      %p1252 = scmp.lt.s32.totalorder %s1251, 31
      %s1253 = scalar_select %p1252, %s1251, 31
      %s1254 = smul.addr %s1253, 4
      %s1255 = scalar_lea.vmem %s10, %s1254
      %s1256 = smul.u32 16, %s23
      %p1257 = scmp.lt.s32.totalorder %s1256, 31
      %s1258 = scalar_select %p1257, %s1256, 31
      %s1259 = smul.addr %s1258, 4
      %s1260 = scalar_lea.vmem %s11, %s1259
      // Predicated region
      $region57: #{dsmil_forward.2} parent=55 // pred_check
        %p1261 = pneg %p235
      $region58: #{dsmil_forward.2} parent=55 // pred_check_branch
        %1263 = sbr.rel (%p1261) target = $region60
      $region59: #{dsmil_forward.2} parent=55 // pred_region
        _
      $region60: #{dsmil_forward.2} parent=55 // pred_fallthru
        _
      // Predicated region
      $region61: #{dsmil_forward.2} parent=55 // pred_check
        %p1264 = pneg %p261
      $region62: #{dsmil_forward.2} parent=55 // pred_check_branch
        %1266 = sbr.rel (%p1264) target = $region64
      $region63: #{dsmil_forward.2} parent=55 // pred_region
        %s1267 = smul.u32 16, %s23
      $region64: #{dsmil_forward.2} parent=55 // pred_fallthru
        _
      // Predicated region
      $region65: #{dsmil_forward.2} parent=55 // pred_check
        %p1268 = pneg %p287
      $region66: #{dsmil_forward.2} parent=55 // pred_check_branch
        %1270 = sbr.rel (%p1268) target = $region68
      $region67: #{dsmil_forward.2} parent=55 // pred_region
        %s1271 = smul.u32 16, %s23
      $region68: #{dsmil_forward.2} parent=55 // pred_fallthru
        _
    $region56: #{dsmil_forward.2} parent=5 // pred_fallthru
      _
    %p1272 = scmp.le.s32.totalorder 2, %s18
    // Predicated region
    $region69: #{dsmil_forward.2} parent=5 // pred_check
      %p1273 = pneg %p1272
    $region70: #{dsmil_forward.2} parent=5 // pred_check_branch
      %1275 = sbr.rel (%p1273) target = $region72
    $region71: #{dsmil_forward.2} parent=5 // pred_region
      %s1276 = ssub.s32 %s18, 2
      // Predicated region
      $region73: #{dsmil_forward.2} parent=71 // pred_check
        %p1277 = pneg %p241
      $region74: #{dsmil_forward.2} parent=71 // pred_check_branch
        %1279 = sbr.rel (%p1277) target = $region76
      $region75: #{dsmil_forward.2} parent=71 // pred_region
        %p1280 = scmp.lt.s32.totalorder %s24, 1
        %s1281 = scalar_select %p1280, %s24, 1
        %s1282 = smul.addr %s1281, 2
        %s1283 = scalar_lea.vmem %s9, %s1282
      $region76: #{dsmil_forward.2} parent=71 // pred_fallthru
        _
      // Predicated region
      $region77: #{dsmil_forward.2} parent=71 // pred_check
        %p1284 = pneg %p267
      $region78: #{dsmil_forward.2} parent=71 // pred_check_branch
        %1286 = sbr.rel (%p1284) target = $region80
      $region79: #{dsmil_forward.2} parent=71 // pred_region
        %s1287 = smul.u32 16, %s24
        %p1288 = scmp.lt.s32.totalorder %s1287, 31
        %s1289 = scalar_select %p1288, %s1287, 31
        %s1290 = smul.addr %s1289, 4
        %s1291 = scalar_lea.vmem %s10, %s1290
      $region80: #{dsmil_forward.2} parent=71 // pred_fallthru
        _
      // Predicated region
      $region81: #{dsmil_forward.2} parent=71 // pred_check
        %p1292 = pneg %p293
      $region82: #{dsmil_forward.2} parent=71 // pred_check_branch
        %1294 = sbr.rel (%p1292) target = $region84
      $region83: #{dsmil_forward.2} parent=71 // pred_region
        %s1295 = smul.u32 16, %s24
        %p1296 = scmp.lt.s32.totalorder %s1295, 31
        %s1297 = scalar_select %p1296, %s1295, 31
        %s1298 = smul.addr %s1297, 4
        %s1299 = scalar_lea.vmem %s11, %s1298
      $region84: #{dsmil_forward.2} parent=71 // pred_fallthru
        _
    $region72: #{dsmil_forward.2} parent=5 // pred_fallthru
      _
  $region6: #{dsmil_forward.2} parent=0 // loop_footer
    %s22 = sadd.s32 1, %s18
  $region7: #{dsmil_forward.2} parent=0 // loop_footer_branch
    %17 = sbr.rel target = $region3
  $region8: #{dsmil_forward.2} parent=0 // loop_exit
    _

</llo_original>
